<compile_context>
chip_gen: v7x
topology: tpu7x:2x2x1
jax: 0.10.0
libtpu: 0.0.40
codegen_flags: <defaults>
</compile_context>

<pallas_src>
import functools

import jax
import jax.numpy as jnp
from jax.experimental import pallas as pl
from jax.experimental.pallas import tpu as pltpu


def _decoder_kernel(x0_ref, h0_ref, c0_ref, w_cat_ref, b_ref, w_fc_ref,
                    b_fc_ref, out_ref, *, seq_length, hidden, num_layers,
                    output_dim):
    """Whole decoder recurrence in one kernel invocation (no grid).

    x0_ref    : (B, H)        initial decoder input (learned vector, broadcast)
    h0_ref    : (L, B, H)     initial hidden state
    c0_ref    : (L, B, H)     initial cell state
    w_cat_ref : (L, 2H, 4H)   fused [w_ih; w_hh]^T, PyTorch gate order i,f,g,o
    b_ref     : (L, 1, 4H)    combined bias (b_ih + b_hh)
    w_fc_ref  : (H, O)        fc weight (transposed)
    b_fc_ref  : (1, O)        fc bias
    out_ref   : (B, T*O)      lane-dense packed outputs (y_t at lanes [t*O,(t+1)*O))
    """
    batch = x0_ref.shape[0]
    H = hidden

    # ---- hoist all loop-invariant loads / broadcasts out of the time loop ----
    w_cat = [w_cat_ref[l] for l in range(num_layers)]                  # (2H, 4H)
    bias = [jnp.broadcast_to(b_ref[l], (batch, 4 * H))                 # (B, 4H)
            for l in range(num_layers)]
    w_fc = w_fc_ref[...]                                               # (H, O)
    b_fc = jnp.broadcast_to(b_fc_ref[...], (batch, output_dim))        # (B, O)

    # ---- recurrent state lives in registers (a handful of vregs) ----
    x = x0_ref[...]
    h = [h0_ref[l] for l in range(num_layers)]
    c = [c0_ref[l] for l in range(num_layers)]

    ys = []
    # Fully unrolled time loop (T is static and small) so the LLO scheduler can
    # overlap the off-critical-path fc matmul with the next step's gate matmul.
    for _t in range(seq_length):
        for layer in range(num_layers):
            # Fused gate matmul: one K=2H MXU push per layer per step.
            cat = jnp.concatenate([x, h[layer]], axis=1)               # (B, 2H)
            # TODO(synk): default matmul precision (not Precision.HIGHEST);
            # small f32 drift vs the PyTorch/HIGHEST reference is accepted.
            gates = jnp.dot(cat, w_cat[layer],
                            preferred_element_type=jnp.float32) + bias[layer]
            # Full-vreg transcendentals, then slice gates (3 EUP pushes total).
            sig = jax.nn.sigmoid(gates)
            th = jnp.tanh(gates)
            i_g = sig[:, 0 * H:1 * H]
            f_g = sig[:, 1 * H:2 * H]
            g_g = th[:, 2 * H:3 * H]
            o_g = sig[:, 3 * H:4 * H]
            c_new = f_g * c[layer] + i_g * g_g
            h_new = o_g * jnp.tanh(c_new)
            h[layer] = h_new
            c[layer] = c_new
            x = h_new                                                  # feed up

        # fc head (not on the recurrent path — x was already fed back).
        ys.append(jnp.dot(x, w_fc, preferred_element_type=jnp.float32) + b_fc)

    # Single lane-dense store of all T steps at once: (B, T*O).
    out_ref[...] = jnp.concatenate(ys, axis=1).astype(out_ref.dtype)


def decoder_forward(initial_vector, hidden, cell, lstm_params, fc_w, fc_b,
                    seq_length, batch_size):
    """JAX wrapper: param plumbing + pallas_call. Returns (batch, T, output_dim)."""
    num_layers, _, H = hidden.shape
    O = fc_w.shape[0]

    x0 = jnp.broadcast_to(initial_vector.reshape(1, H),
                          (batch_size, H)).astype(jnp.float32)
    # Fused per-layer weight: rows 0..H-1 = w_ih^T, rows H..2H-1 = w_hh^T.
    w_cat = jnp.stack([jnp.concatenate([p["w_ih"], p["w_hh"]], axis=1).T
                       for p in lstm_params])                          # (L, 2H, 4H)
    b = jnp.stack([(p["b_ih"] + p["b_hh"]).reshape(1, 4 * H)
                   for p in lstm_params])                              # (L, 1, 4H)
    w_fc_t = fc_w.T                                                    # (H, O)
    b_fc = fc_b.reshape(1, O)

    kern = functools.partial(_decoder_kernel,
                             seq_length=seq_length, hidden=H,
                             num_layers=num_layers, output_dim=O)

    out_flat = pl.pallas_call(
        kern,
        out_shape=jax.ShapeDtypeStruct((batch_size, seq_length * O), jnp.float32),
        in_specs=[pl.BlockSpec(memory_space=pltpu.MemorySpace.VMEM)] * 7,
        out_specs=pl.BlockSpec(memory_space=pltpu.MemorySpace.VMEM),
    )(x0, hidden, cell, w_cat, b, w_fc_t, b_fc)

    # Lane-dense (B, T*O) -> PyTorch convention (B, T, O).
    return out_flat.reshape(batch_size, seq_length, O)


def decoder_reference(initial_vector, hidden, cell, lstm_params, fc_w, fc_b,
                      seq_length, batch_size):
    """Pure-JAX reference (same math, no Pallas) for a correctness check."""
    num_layers, _, H = hidden.shape
    hi = jax.lax.Precision.HIGHEST
    x = jnp.broadcast_to(initial_vector.reshape(1, H), (batch_size, H))
    h = [hidden[l] for l in range(num_layers)]
    c = [cell[l] for l in range(num_layers)]
    outs = []
    for _ in range(seq_length):
        inp = x
        for l in range(num_layers):
            p = lstm_params[l]
            gates = (jnp.dot(inp, p["w_ih"].T, precision=hi)
                     + jnp.dot(h[l], p["w_hh"].T, precision=hi)
                     + p["b_ih"] + p["b_hh"])
            i_g = jax.nn.sigmoid(gates[:, 0 * H:1 * H])
            f_g = jax.nn.sigmoid(gates[:, 1 * H:2 * H])
            g_g = jnp.tanh(gates[:, 2 * H:3 * H])
            o_g = jax.nn.sigmoid(gates[:, 3 * H:4 * H])
            c[l] = f_g * c[l] + i_g * g_g
            h[l] = o_g * jnp.tanh(c[l])
            inp = h[l]
        x = inp
        outs.append(jnp.dot(inp, fc_w.T, precision=hi) + fc_b)
    return jnp.stack(outs, axis=1)                                     # (B, T, O)


if __name__ == "__main__":
    # Small shapes consistent with the module.
    input_dim = 32      # H (LSTM hidden == input_dim)
    output_dim = 16     # O
    num_layers = 2
    batch_size = 2
    seq_length = 8

    key = jax.random.PRNGKey(0)
    keys = jax.random.split(key, 4 * num_layers + 5)
    k = 1.0 / jnp.sqrt(jnp.float32(input_dim))

    lstm_params = []
    for l in range(num_layers):
        kw = keys[4 * l:4 * l + 4]
        lstm_params.append({
            "w_ih": jax.random.uniform(kw[0], (4 * input_dim, input_dim),
                                       jnp.float32, -k, k),
            "w_hh": jax.random.uniform(kw[1], (4 * input_dim, input_dim),
                                       jnp.float32, -k, k),
            "b_ih": jax.random.uniform(kw[2], (4 * input_dim,), jnp.float32, -k, k),
            "b_hh": jax.random.uniform(kw[3], (4 * input_dim,), jnp.float32, -k, k),
        })
    fc_w = jax.random.uniform(keys[-5], (output_dim, input_dim), jnp.float32, -k, k)
    fc_b = jax.random.uniform(keys[-4], (output_dim,), jnp.float32, -k, k)
    initial_vector = jax.random.normal(keys[-3], (1, 1, input_dim), jnp.float32)
    hidden = jax.random.normal(keys[-2], (num_layers, batch_size, input_dim), jnp.float32)
    cell = jax.random.normal(keys[-1], (num_layers, batch_size, input_dim), jnp.float32)

    out = decoder_forward(initial_vector, hidden, cell, lstm_params, fc_w, fc_b,
                          seq_length, batch_size)
    out = jax.block_until_ready(out)

    ref = decoder_reference(initial_vector, hidden, cell, lstm_params, fc_w, fc_b,
                            seq_length, batch_size)
    assert out.shape == (batch_size, seq_length, output_dim)
    assert jnp.allclose(out, ref, atol=2e-2, rtol=2e-2), float(jnp.max(jnp.abs(out - ref)))

    print("KERNEL_OK")
</pallas_src>

<mosaic_0001>
module attributes {stable_mosaic.version = 11 : i64} {
  func.func @_decoder_kernel(%arg0: memref<2x32xf32, #tpu.memory_space<vmem>>, %arg1: memref<2x2x32xf32, #tpu.memory_space<vmem>>, %arg2: memref<2x2x32xf32, #tpu.memory_space<vmem>>, %arg3: memref<2x64x128xf32, #tpu.memory_space<vmem>>, %arg4: memref<2x1x128xf32, #tpu.memory_space<vmem>>, %arg5: memref<32x16xf32, #tpu.memory_space<vmem>>, %arg6: memref<1x16xf32, #tpu.memory_space<vmem>>, %arg7: memref<2x128xf32, #tpu.memory_space<vmem>>) attributes {dimension_semantics = [], scalar_prefetch = 0 : i64, scratch_operands = 0 : i64, tpu.core_type = #tpu.core_type<tc>} {
    %c0 = arith.constant 0 : index
    %c0_0 = arith.constant 0 : index
    %c0_1 = arith.constant 0 : index
    %0 = vector.load %arg3[%c0, %c0_0, %c0_1] : memref<2x64x128xf32, #tpu.memory_space<vmem>>, vector<1x64x128xf32>
    %1 = vector.shape_cast %0 : vector<1x64x128xf32> to vector<64x128xf32>
    %c1 = arith.constant 1 : index
    %c0_2 = arith.constant 0 : index
    %c0_3 = arith.constant 0 : index
    %2 = vector.load %arg3[%c1, %c0_2, %c0_3] : memref<2x64x128xf32, #tpu.memory_space<vmem>>, vector<1x64x128xf32>
    %3 = vector.shape_cast %2 : vector<1x64x128xf32> to vector<64x128xf32>
    %c0_4 = arith.constant 0 : index
    %c0_5 = arith.constant 0 : index
    %c0_6 = arith.constant 0 : index
    %4 = vector.load %arg4[%c0_4, %c0_5, %c0_6] : memref<2x1x128xf32, #tpu.memory_space<vmem>>, vector<1x1x128xf32>
    %5 = vector.shape_cast %4 : vector<1x1x128xf32> to vector<1x128xf32>
    %6 = vector.shape_cast %5 : vector<1x128xf32> to vector<1x128xf32>
    %7 = vector.broadcast %6 : vector<1x128xf32> to vector<2x128xf32>
    %c1_7 = arith.constant 1 : index
    %c0_8 = arith.constant 0 : index
    %c0_9 = arith.constant 0 : index
    %8 = vector.load %arg4[%c1_7, %c0_8, %c0_9] : memref<2x1x128xf32, #tpu.memory_space<vmem>>, vector<1x1x128xf32>
    %9 = vector.shape_cast %8 : vector<1x1x128xf32> to vector<1x128xf32>
    %10 = vector.shape_cast %9 : vector<1x128xf32> to vector<1x128xf32>
    %11 = vector.broadcast %10 : vector<1x128xf32> to vector<2x128xf32>
    %c0_10 = arith.constant 0 : index
    %c0_11 = arith.constant 0 : index
    %12 = vector.load %arg5[%c0_10, %c0_11] : memref<32x16xf32, #tpu.memory_space<vmem>>, vector<32x16xf32>
    %c0_12 = arith.constant 0 : index
    %c0_13 = arith.constant 0 : index
    %13 = vector.load %arg6[%c0_12, %c0_13] : memref<1x16xf32, #tpu.memory_space<vmem>>, vector<1x16xf32>
    %14 = vector.shape_cast %13 : vector<1x16xf32> to vector<1x16xf32>
    %15 = vector.broadcast %14 : vector<1x16xf32> to vector<2x16xf32>
    %c0_14 = arith.constant 0 : index
    %c0_15 = arith.constant 0 : index
    %16 = vector.load %arg0[%c0_14, %c0_15] : memref<2x32xf32, #tpu.memory_space<vmem>>, vector<2x32xf32>
    %c0_16 = arith.constant 0 : index
    %c0_17 = arith.constant 0 : index
    %c0_18 = arith.constant 0 : index
    %17 = vector.load %arg1[%c0_16, %c0_17, %c0_18] : memref<2x2x32xf32, #tpu.memory_space<vmem>>, vector<1x2x32xf32>
    %18 = vector.shape_cast %17 : vector<1x2x32xf32> to vector<2x32xf32>
    %c1_19 = arith.constant 1 : index
    %c0_20 = arith.constant 0 : index
    %c0_21 = arith.constant 0 : index
    %19 = vector.load %arg1[%c1_19, %c0_20, %c0_21] : memref<2x2x32xf32, #tpu.memory_space<vmem>>, vector<1x2x32xf32>
    %20 = vector.shape_cast %19 : vector<1x2x32xf32> to vector<2x32xf32>
    %c0_22 = arith.constant 0 : index
    %c0_23 = arith.constant 0 : index
    %c0_24 = arith.constant 0 : index
    %21 = vector.load %arg2[%c0_22, %c0_23, %c0_24] : memref<2x2x32xf32, #tpu.memory_space<vmem>>, vector<1x2x32xf32>
    %22 = vector.shape_cast %21 : vector<1x2x32xf32> to vector<2x32xf32>
    %c1_25 = arith.constant 1 : index
    %c0_26 = arith.constant 0 : index
    %c0_27 = arith.constant 0 : index
    %23 = vector.load %arg2[%c1_25, %c0_26, %c0_27] : memref<2x2x32xf32, #tpu.memory_space<vmem>>, vector<1x2x32xf32>
    %24 = vector.shape_cast %23 : vector<1x2x32xf32> to vector<2x32xf32>
    %25 = tpu.concatenate %16, %18 in 1 : vector<2x32xf32>, vector<2x32xf32> -> vector<2x64xf32>
    %cst = arith.constant dense<0.000000e+00> : vector<2x128xf32>
    %26 = tpu.matmul %25, %1, %cst {dimension_numbers = #tpu.dot_dimension_numbers<[1], [0], [0], [1], [0, 0, 1, 1], [], []>} : vector<2x64xf32>, vector<64x128xf32>, vector<2x128xf32> -> vector<2x128xf32>
    %27 = arith.addf %26, %7 : vector<2x128xf32>
    %28 = arith.negf %27 : vector<2x128xf32>
    %29 = math.exp %28 : vector<2x128xf32>
    %cst_28 = arith.constant 1.000000e+00 : f32
    %30 = vector.broadcast %cst_28 : f32 to vector<2x128xf32>
    %31 = arith.addf %30, %29 : vector<2x128xf32>
    %32 = arith.divf %30, %31 : vector<2x128xf32>
    %33 = math.tanh %27 : vector<2x128xf32>
    %34 = vector.extract_strided_slice %32 {offsets = [0, 0], sizes = [2, 32], strides = [1, 1]} : vector<2x128xf32> to vector<2x32xf32>
    %35 = vector.extract_strided_slice %32 {offsets = [0, 32], sizes = [2, 32], strides = [1, 1]} : vector<2x128xf32> to vector<2x32xf32>
    %36 = vector.extract_strided_slice %33 {offsets = [0, 64], sizes = [2, 32], strides = [1, 1]} : vector<2x128xf32> to vector<2x32xf32>
    %37 = vector.extract_strided_slice %32 {offsets = [0, 96], sizes = [2, 32], strides = [1, 1]} : vector<2x128xf32> to vector<2x32xf32>
    %38 = arith.mulf %35, %22 : vector<2x32xf32>
    %39 = arith.mulf %34, %36 : vector<2x32xf32>
    %40 = arith.addf %38, %39 : vector<2x32xf32>
    %41 = math.tanh %40 : vector<2x32xf32>
    %42 = arith.mulf %37, %41 : vector<2x32xf32>
    %43 = tpu.concatenate %42, %20 in 1 : vector<2x32xf32>, vector<2x32xf32> -> vector<2x64xf32>
    %cst_29 = arith.constant dense<0.000000e+00> : vector<2x128xf32>
    %44 = tpu.matmul %43, %3, %cst_29 {dimension_numbers = #tpu.dot_dimension_numbers<[1], [0], [0], [1], [0, 0, 1, 1], [], []>} : vector<2x64xf32>, vector<64x128xf32>, vector<2x128xf32> -> vector<2x128xf32>
    %45 = arith.addf %44, %11 : vector<2x128xf32>
    %46 = arith.negf %45 : vector<2x128xf32>
    %47 = math.exp %46 : vector<2x128xf32>
    %cst_30 = arith.constant 1.000000e+00 : f32
    %48 = vector.broadcast %cst_30 : f32 to vector<2x128xf32>
    %49 = arith.addf %48, %47 : vector<2x128xf32>
    %50 = arith.divf %48, %49 : vector<2x128xf32>
    %51 = math.tanh %45 : vector<2x128xf32>
    %52 = vector.extract_strided_slice %50 {offsets = [0, 0], sizes = [2, 32], strides = [1, 1]} : vector<2x128xf32> to vector<2x32xf32>
    %53 = vector.extract_strided_slice %50 {offsets = [0, 32], sizes = [2, 32], strides = [1, 1]} : vector<2x128xf32> to vector<2x32xf32>
    %54 = vector.extract_strided_slice %51 {offsets = [0, 64], sizes = [2, 32], strides = [1, 1]} : vector<2x128xf32> to vector<2x32xf32>
    %55 = vector.extract_strided_slice %50 {offsets = [0, 96], sizes = [2, 32], strides = [1, 1]} : vector<2x128xf32> to vector<2x32xf32>
    %56 = arith.mulf %53, %24 : vector<2x32xf32>
    %57 = arith.mulf %52, %54 : vector<2x32xf32>
    %58 = arith.addf %56, %57 : vector<2x32xf32>
    %59 = math.tanh %58 : vector<2x32xf32>
    %60 = arith.mulf %55, %59 : vector<2x32xf32>
    %cst_31 = arith.constant dense<0.000000e+00> : vector<2x16xf32>
    %61 = tpu.matmul %60, %12, %cst_31 {dimension_numbers = #tpu.dot_dimension_numbers<[1], [0], [0], [1], [0, 0, 1, 1], [], []>} : vector<2x32xf32>, vector<32x16xf32>, vector<2x16xf32> -> vector<2x16xf32>
    %62 = arith.addf %61, %15 : vector<2x16xf32>
    %63 = tpu.concatenate %60, %42 in 1 : vector<2x32xf32>, vector<2x32xf32> -> vector<2x64xf32>
    %cst_32 = arith.constant dense<0.000000e+00> : vector<2x128xf32>
    %64 = tpu.matmul %63, %1, %cst_32 {dimension_numbers = #tpu.dot_dimension_numbers<[1], [0], [0], [1], [0, 0, 1, 1], [], []>} : vector<2x64xf32>, vector<64x128xf32>, vector<2x128xf32> -> vector<2x128xf32>
    %65 = arith.addf %64, %7 : vector<2x128xf32>
    %66 = arith.negf %65 : vector<2x128xf32>
    %67 = math.exp %66 : vector<2x128xf32>
    %cst_33 = arith.constant 1.000000e+00 : f32
    %68 = vector.broadcast %cst_33 : f32 to vector<2x128xf32>
    %69 = arith.addf %68, %67 : vector<2x128xf32>
    %70 = arith.divf %68, %69 : vector<2x128xf32>
    %71 = math.tanh %65 : vector<2x128xf32>
    %72 = vector.extract_strided_slice %70 {offsets = [0, 0], sizes = [2, 32], strides = [1, 1]} : vector<2x128xf32> to vector<2x32xf32>
    %73 = vector.extract_strided_slice %70 {offsets = [0, 32], sizes = [2, 32], strides = [1, 1]} : vector<2x128xf32> to vector<2x32xf32>
    %74 = vector.extract_strided_slice %71 {offsets = [0, 64], sizes = [2, 32], strides = [1, 1]} : vector<2x128xf32> to vector<2x32xf32>
    %75 = vector.extract_strided_slice %70 {offsets = [0, 96], sizes = [2, 32], strides = [1, 1]} : vector<2x128xf32> to vector<2x32xf32>
    %76 = arith.mulf %73, %40 : vector<2x32xf32>
    %77 = arith.mulf %72, %74 : vector<2x32xf32>
    %78 = arith.addf %76, %77 : vector<2x32xf32>
    %79 = math.tanh %78 : vector<2x32xf32>
    %80 = arith.mulf %75, %79 : vector<2x32xf32>
    %81 = tpu.concatenate %80, %60 in 1 : vector<2x32xf32>, vector<2x32xf32> -> vector<2x64xf32>
    %cst_34 = arith.constant dense<0.000000e+00> : vector<2x128xf32>
    %82 = tpu.matmul %81, %3, %cst_34 {dimension_numbers = #tpu.dot_dimension_numbers<[1], [0], [0], [1], [0, 0, 1, 1], [], []>} : vector<2x64xf32>, vector<64x128xf32>, vector<2x128xf32> -> vector<2x128xf32>
    %83 = arith.addf %82, %11 : vector<2x128xf32>
    %84 = arith.negf %83 : vector<2x128xf32>
    %85 = math.exp %84 : vector<2x128xf32>
    %cst_35 = arith.constant 1.000000e+00 : f32
    %86 = vector.broadcast %cst_35 : f32 to vector<2x128xf32>
    %87 = arith.addf %86, %85 : vector<2x128xf32>
    %88 = arith.divf %86, %87 : vector<2x128xf32>
    %89 = math.tanh %83 : vector<2x128xf32>
    %90 = vector.extract_strided_slice %88 {offsets = [0, 0], sizes = [2, 32], strides = [1, 1]} : vector<2x128xf32> to vector<2x32xf32>
    %91 = vector.extract_strided_slice %88 {offsets = [0, 32], sizes = [2, 32], strides = [1, 1]} : vector<2x128xf32> to vector<2x32xf32>
    %92 = vector.extract_strided_slice %89 {offsets = [0, 64], sizes = [2, 32], strides = [1, 1]} : vector<2x128xf32> to vector<2x32xf32>
    %93 = vector.extract_strided_slice %88 {offsets = [0, 96], sizes = [2, 32], strides = [1, 1]} : vector<2x128xf32> to vector<2x32xf32>
    %94 = arith.mulf %91, %58 : vector<2x32xf32>
    %95 = arith.mulf %90, %92 : vector<2x32xf32>
    %96 = arith.addf %94, %95 : vector<2x32xf32>
    %97 = math.tanh %96 : vector<2x32xf32>
    %98 = arith.mulf %93, %97 : vector<2x32xf32>
    %cst_36 = arith.constant dense<0.000000e+00> : vector<2x16xf32>
    %99 = tpu.matmul %98, %12, %cst_36 {dimension_numbers = #tpu.dot_dimension_numbers<[1], [0], [0], [1], [0, 0, 1, 1], [], []>} : vector<2x32xf32>, vector<32x16xf32>, vector<2x16xf32> -> vector<2x16xf32>
    %100 = arith.addf %99, %15 : vector<2x16xf32>
    %101 = tpu.concatenate %98, %80 in 1 : vector<2x32xf32>, vector<2x32xf32> -> vector<2x64xf32>
    %cst_37 = arith.constant dense<0.000000e+00> : vector<2x128xf32>
    %102 = tpu.matmul %101, %1, %cst_37 {dimension_numbers = #tpu.dot_dimension_numbers<[1], [0], [0], [1], [0, 0, 1, 1], [], []>} : vector<2x64xf32>, vector<64x128xf32>, vector<2x128xf32> -> vector<2x128xf32>
    %103 = arith.addf %102, %7 : vector<2x128xf32>
    %104 = arith.negf %103 : vector<2x128xf32>
    %105 = math.exp %104 : vector<2x128xf32>
    %cst_38 = arith.constant 1.000000e+00 : f32
    %106 = vector.broadcast %cst_38 : f32 to vector<2x128xf32>
    %107 = arith.addf %106, %105 : vector<2x128xf32>
    %108 = arith.divf %106, %107 : vector<2x128xf32>
    %109 = math.tanh %103 : vector<2x128xf32>
    %110 = vector.extract_strided_slice %108 {offsets = [0, 0], sizes = [2, 32], strides = [1, 1]} : vector<2x128xf32> to vector<2x32xf32>
    %111 = vector.extract_strided_slice %108 {offsets = [0, 32], sizes = [2, 32], strides = [1, 1]} : vector<2x128xf32> to vector<2x32xf32>
    %112 = vector.extract_strided_slice %109 {offsets = [0, 64], sizes = [2, 32], strides = [1, 1]} : vector<2x128xf32> to vector<2x32xf32>
    %113 = vector.extract_strided_slice %108 {offsets = [0, 96], sizes = [2, 32], strides = [1, 1]} : vector<2x128xf32> to vector<2x32xf32>
    %114 = arith.mulf %111, %78 : vector<2x32xf32>
    %115 = arith.mulf %110, %112 : vector<2x32xf32>
    %116 = arith.addf %114, %115 : vector<2x32xf32>
    %117 = math.tanh %116 : vector<2x32xf32>
    %118 = arith.mulf %113, %117 : vector<2x32xf32>
    %119 = tpu.concatenate %118, %98 in 1 : vector<2x32xf32>, vector<2x32xf32> -> vector<2x64xf32>
    %cst_39 = arith.constant dense<0.000000e+00> : vector<2x128xf32>
    %120 = tpu.matmul %119, %3, %cst_39 {dimension_numbers = #tpu.dot_dimension_numbers<[1], [0], [0], [1], [0, 0, 1, 1], [], []>} : vector<2x64xf32>, vector<64x128xf32>, vector<2x128xf32> -> vector<2x128xf32>
    %121 = arith.addf %120, %11 : vector<2x128xf32>
    %122 = arith.negf %121 : vector<2x128xf32>
    %123 = math.exp %122 : vector<2x128xf32>
    %cst_40 = arith.constant 1.000000e+00 : f32
    %124 = vector.broadcast %cst_40 : f32 to vector<2x128xf32>
    %125 = arith.addf %124, %123 : vector<2x128xf32>
    %126 = arith.divf %124, %125 : vector<2x128xf32>
    %127 = math.tanh %121 : vector<2x128xf32>
    %128 = vector.extract_strided_slice %126 {offsets = [0, 0], sizes = [2, 32], strides = [1, 1]} : vector<2x128xf32> to vector<2x32xf32>
    %129 = vector.extract_strided_slice %126 {offsets = [0, 32], sizes = [2, 32], strides = [1, 1]} : vector<2x128xf32> to vector<2x32xf32>
    %130 = vector.extract_strided_slice %127 {offsets = [0, 64], sizes = [2, 32], strides = [1, 1]} : vector<2x128xf32> to vector<2x32xf32>
    %131 = vector.extract_strided_slice %126 {offsets = [0, 96], sizes = [2, 32], strides = [1, 1]} : vector<2x128xf32> to vector<2x32xf32>
    %132 = arith.mulf %129, %96 : vector<2x32xf32>
    %133 = arith.mulf %128, %130 : vector<2x32xf32>
    %134 = arith.addf %132, %133 : vector<2x32xf32>
    %135 = math.tanh %134 : vector<2x32xf32>
    %136 = arith.mulf %131, %135 : vector<2x32xf32>
    %cst_41 = arith.constant dense<0.000000e+00> : vector<2x16xf32>
    %137 = tpu.matmul %136, %12, %cst_41 {dimension_numbers = #tpu.dot_dimension_numbers<[1], [0], [0], [1], [0, 0, 1, 1], [], []>} : vector<2x32xf32>, vector<32x16xf32>, vector<2x16xf32> -> vector<2x16xf32>
    %138 = arith.addf %137, %15 : vector<2x16xf32>
    %139 = tpu.concatenate %136, %118 in 1 : vector<2x32xf32>, vector<2x32xf32> -> vector<2x64xf32>
    %cst_42 = arith.constant dense<0.000000e+00> : vector<2x128xf32>
    %140 = tpu.matmul %139, %1, %cst_42 {dimension_numbers = #tpu.dot_dimension_numbers<[1], [0], [0], [1], [0, 0, 1, 1], [], []>} : vector<2x64xf32>, vector<64x128xf32>, vector<2x128xf32> -> vector<2x128xf32>
    %141 = arith.addf %140, %7 : vector<2x128xf32>
    %142 = arith.negf %141 : vector<2x128xf32>
    %143 = math.exp %142 : vector<2x128xf32>
    %cst_43 = arith.constant 1.000000e+00 : f32
    %144 = vector.broadcast %cst_43 : f32 to vector<2x128xf32>
    %145 = arith.addf %144, %143 : vector<2x128xf32>
    %146 = arith.divf %144, %145 : vector<2x128xf32>
    %147 = math.tanh %141 : vector<2x128xf32>
    %148 = vector.extract_strided_slice %146 {offsets = [0, 0], sizes = [2, 32], strides = [1, 1]} : vector<2x128xf32> to vector<2x32xf32>
    %149 = vector.extract_strided_slice %146 {offsets = [0, 32], sizes = [2, 32], strides = [1, 1]} : vector<2x128xf32> to vector<2x32xf32>
    %150 = vector.extract_strided_slice %147 {offsets = [0, 64], sizes = [2, 32], strides = [1, 1]} : vector<2x128xf32> to vector<2x32xf32>
    %151 = vector.extract_strided_slice %146 {offsets = [0, 96], sizes = [2, 32], strides = [1, 1]} : vector<2x128xf32> to vector<2x32xf32>
    %152 = arith.mulf %149, %116 : vector<2x32xf32>
    %153 = arith.mulf %148, %150 : vector<2x32xf32>
    %154 = arith.addf %152, %153 : vector<2x32xf32>
    %155 = math.tanh %154 : vector<2x32xf32>
    %156 = arith.mulf %151, %155 : vector<2x32xf32>
    %157 = tpu.concatenate %156, %136 in 1 : vector<2x32xf32>, vector<2x32xf32> -> vector<2x64xf32>
    %cst_44 = arith.constant dense<0.000000e+00> : vector<2x128xf32>
    %158 = tpu.matmul %157, %3, %cst_44 {dimension_numbers = #tpu.dot_dimension_numbers<[1], [0], [0], [1], [0, 0, 1, 1], [], []>} : vector<2x64xf32>, vector<64x128xf32>, vector<2x128xf32> -> vector<2x128xf32>
    %159 = arith.addf %158, %11 : vector<2x128xf32>
    %160 = arith.negf %159 : vector<2x128xf32>
    %161 = math.exp %160 : vector<2x128xf32>
    %cst_45 = arith.constant 1.000000e+00 : f32
    %162 = vector.broadcast %cst_45 : f32 to vector<2x128xf32>
    %163 = arith.addf %162, %161 : vector<2x128xf32>
    %164 = arith.divf %162, %163 : vector<2x128xf32>
    %165 = math.tanh %159 : vector<2x128xf32>
    %166 = vector.extract_strided_slice %164 {offsets = [0, 0], sizes = [2, 32], strides = [1, 1]} : vector<2x128xf32> to vector<2x32xf32>
    %167 = vector.extract_strided_slice %164 {offsets = [0, 32], sizes = [2, 32], strides = [1, 1]} : vector<2x128xf32> to vector<2x32xf32>
    %168 = vector.extract_strided_slice %165 {offsets = [0, 64], sizes = [2, 32], strides = [1, 1]} : vector<2x128xf32> to vector<2x32xf32>
    %169 = vector.extract_strided_slice %164 {offsets = [0, 96], sizes = [2, 32], strides = [1, 1]} : vector<2x128xf32> to vector<2x32xf32>
    %170 = arith.mulf %167, %134 : vector<2x32xf32>
    %171 = arith.mulf %166, %168 : vector<2x32xf32>
    %172 = arith.addf %170, %171 : vector<2x32xf32>
    %173 = math.tanh %172 : vector<2x32xf32>
    %174 = arith.mulf %169, %173 : vector<2x32xf32>
    %cst_46 = arith.constant dense<0.000000e+00> : vector<2x16xf32>
    %175 = tpu.matmul %174, %12, %cst_46 {dimension_numbers = #tpu.dot_dimension_numbers<[1], [0], [0], [1], [0, 0, 1, 1], [], []>} : vector<2x32xf32>, vector<32x16xf32>, vector<2x16xf32> -> vector<2x16xf32>
    %176 = arith.addf %175, %15 : vector<2x16xf32>
    %177 = tpu.concatenate %174, %156 in 1 : vector<2x32xf32>, vector<2x32xf32> -> vector<2x64xf32>
    %cst_47 = arith.constant dense<0.000000e+00> : vector<2x128xf32>
    %178 = tpu.matmul %177, %1, %cst_47 {dimension_numbers = #tpu.dot_dimension_numbers<[1], [0], [0], [1], [0, 0, 1, 1], [], []>} : vector<2x64xf32>, vector<64x128xf32>, vector<2x128xf32> -> vector<2x128xf32>
    %179 = arith.addf %178, %7 : vector<2x128xf32>
    %180 = arith.negf %179 : vector<2x128xf32>
    %181 = math.exp %180 : vector<2x128xf32>
    %cst_48 = arith.constant 1.000000e+00 : f32
    %182 = vector.broadcast %cst_48 : f32 to vector<2x128xf32>
    %183 = arith.addf %182, %181 : vector<2x128xf32>
    %184 = arith.divf %182, %183 : vector<2x128xf32>
    %185 = math.tanh %179 : vector<2x128xf32>
    %186 = vector.extract_strided_slice %184 {offsets = [0, 0], sizes = [2, 32], strides = [1, 1]} : vector<2x128xf32> to vector<2x32xf32>
    %187 = vector.extract_strided_slice %184 {offsets = [0, 32], sizes = [2, 32], strides = [1, 1]} : vector<2x128xf32> to vector<2x32xf32>
    %188 = vector.extract_strided_slice %185 {offsets = [0, 64], sizes = [2, 32], strides = [1, 1]} : vector<2x128xf32> to vector<2x32xf32>
    %189 = vector.extract_strided_slice %184 {offsets = [0, 96], sizes = [2, 32], strides = [1, 1]} : vector<2x128xf32> to vector<2x32xf32>
    %190 = arith.mulf %187, %154 : vector<2x32xf32>
    %191 = arith.mulf %186, %188 : vector<2x32xf32>
    %192 = arith.addf %190, %191 : vector<2x32xf32>
    %193 = math.tanh %192 : vector<2x32xf32>
    %194 = arith.mulf %189, %193 : vector<2x32xf32>
    %195 = tpu.concatenate %194, %174 in 1 : vector<2x32xf32>, vector<2x32xf32> -> vector<2x64xf32>
    %cst_49 = arith.constant dense<0.000000e+00> : vector<2x128xf32>
    %196 = tpu.matmul %195, %3, %cst_49 {dimension_numbers = #tpu.dot_dimension_numbers<[1], [0], [0], [1], [0, 0, 1, 1], [], []>} : vector<2x64xf32>, vector<64x128xf32>, vector<2x128xf32> -> vector<2x128xf32>
    %197 = arith.addf %196, %11 : vector<2x128xf32>
    %198 = arith.negf %197 : vector<2x128xf32>
    %199 = math.exp %198 : vector<2x128xf32>
    %cst_50 = arith.constant 1.000000e+00 : f32
    %200 = vector.broadcast %cst_50 : f32 to vector<2x128xf32>
    %201 = arith.addf %200, %199 : vector<2x128xf32>
    %202 = arith.divf %200, %201 : vector<2x128xf32>
    %203 = math.tanh %197 : vector<2x128xf32>
    %204 = vector.extract_strided_slice %202 {offsets = [0, 0], sizes = [2, 32], strides = [1, 1]} : vector<2x128xf32> to vector<2x32xf32>
    %205 = vector.extract_strided_slice %202 {offsets = [0, 32], sizes = [2, 32], strides = [1, 1]} : vector<2x128xf32> to vector<2x32xf32>
    %206 = vector.extract_strided_slice %203 {offsets = [0, 64], sizes = [2, 32], strides = [1, 1]} : vector<2x128xf32> to vector<2x32xf32>
    %207 = vector.extract_strided_slice %202 {offsets = [0, 96], sizes = [2, 32], strides = [1, 1]} : vector<2x128xf32> to vector<2x32xf32>
    %208 = arith.mulf %205, %172 : vector<2x32xf32>
    %209 = arith.mulf %204, %206 : vector<2x32xf32>
    %210 = arith.addf %208, %209 : vector<2x32xf32>
    %211 = math.tanh %210 : vector<2x32xf32>
    %212 = arith.mulf %207, %211 : vector<2x32xf32>
    %cst_51 = arith.constant dense<0.000000e+00> : vector<2x16xf32>
    %213 = tpu.matmul %212, %12, %cst_51 {dimension_numbers = #tpu.dot_dimension_numbers<[1], [0], [0], [1], [0, 0, 1, 1], [], []>} : vector<2x32xf32>, vector<32x16xf32>, vector<2x16xf32> -> vector<2x16xf32>
    %214 = arith.addf %213, %15 : vector<2x16xf32>
    %215 = tpu.concatenate %212, %194 in 1 : vector<2x32xf32>, vector<2x32xf32> -> vector<2x64xf32>
    %cst_52 = arith.constant dense<0.000000e+00> : vector<2x128xf32>
    %216 = tpu.matmul %215, %1, %cst_52 {dimension_numbers = #tpu.dot_dimension_numbers<[1], [0], [0], [1], [0, 0, 1, 1], [], []>} : vector<2x64xf32>, vector<64x128xf32>, vector<2x128xf32> -> vector<2x128xf32>
    %217 = arith.addf %216, %7 : vector<2x128xf32>
    %218 = arith.negf %217 : vector<2x128xf32>
    %219 = math.exp %218 : vector<2x128xf32>
    %cst_53 = arith.constant 1.000000e+00 : f32
    %220 = vector.broadcast %cst_53 : f32 to vector<2x128xf32>
    %221 = arith.addf %220, %219 : vector<2x128xf32>
    %222 = arith.divf %220, %221 : vector<2x128xf32>
    %223 = math.tanh %217 : vector<2x128xf32>
    %224 = vector.extract_strided_slice %222 {offsets = [0, 0], sizes = [2, 32], strides = [1, 1]} : vector<2x128xf32> to vector<2x32xf32>
    %225 = vector.extract_strided_slice %222 {offsets = [0, 32], sizes = [2, 32], strides = [1, 1]} : vector<2x128xf32> to vector<2x32xf32>
    %226 = vector.extract_strided_slice %223 {offsets = [0, 64], sizes = [2, 32], strides = [1, 1]} : vector<2x128xf32> to vector<2x32xf32>
    %227 = vector.extract_strided_slice %222 {offsets = [0, 96], sizes = [2, 32], strides = [1, 1]} : vector<2x128xf32> to vector<2x32xf32>
    %228 = arith.mulf %225, %192 : vector<2x32xf32>
    %229 = arith.mulf %224, %226 : vector<2x32xf32>
    %230 = arith.addf %228, %229 : vector<2x32xf32>
    %231 = math.tanh %230 : vector<2x32xf32>
    %232 = arith.mulf %227, %231 : vector<2x32xf32>
    %233 = tpu.concatenate %232, %212 in 1 : vector<2x32xf32>, vector<2x32xf32> -> vector<2x64xf32>
    %cst_54 = arith.constant dense<0.000000e+00> : vector<2x128xf32>
    %234 = tpu.matmul %233, %3, %cst_54 {dimension_numbers = #tpu.dot_dimension_numbers<[1], [0], [0], [1], [0, 0, 1, 1], [], []>} : vector<2x64xf32>, vector<64x128xf32>, vector<2x128xf32> -> vector<2x128xf32>
    %235 = arith.addf %234, %11 : vector<2x128xf32>
    %236 = arith.negf %235 : vector<2x128xf32>
    %237 = math.exp %236 : vector<2x128xf32>
    %cst_55 = arith.constant 1.000000e+00 : f32
    %238 = vector.broadcast %cst_55 : f32 to vector<2x128xf32>
    %239 = arith.addf %238, %237 : vector<2x128xf32>
    %240 = arith.divf %238, %239 : vector<2x128xf32>
    %241 = math.tanh %235 : vector<2x128xf32>
    %242 = vector.extract_strided_slice %240 {offsets = [0, 0], sizes = [2, 32], strides = [1, 1]} : vector<2x128xf32> to vector<2x32xf32>
    %243 = vector.extract_strided_slice %240 {offsets = [0, 32], sizes = [2, 32], strides = [1, 1]} : vector<2x128xf32> to vector<2x32xf32>
    %244 = vector.extract_strided_slice %241 {offsets = [0, 64], sizes = [2, 32], strides = [1, 1]} : vector<2x128xf32> to vector<2x32xf32>
    %245 = vector.extract_strided_slice %240 {offsets = [0, 96], sizes = [2, 32], strides = [1, 1]} : vector<2x128xf32> to vector<2x32xf32>
    %246 = arith.mulf %243, %210 : vector<2x32xf32>
    %247 = arith.mulf %242, %244 : vector<2x32xf32>
    %248 = arith.addf %246, %247 : vector<2x32xf32>
    %249 = math.tanh %248 : vector<2x32xf32>
    %250 = arith.mulf %245, %249 : vector<2x32xf32>
    %cst_56 = arith.constant dense<0.000000e+00> : vector<2x16xf32>
    %251 = tpu.matmul %250, %12, %cst_56 {dimension_numbers = #tpu.dot_dimension_numbers<[1], [0], [0], [1], [0, 0, 1, 1], [], []>} : vector<2x32xf32>, vector<32x16xf32>, vector<2x16xf32> -> vector<2x16xf32>
    %252 = arith.addf %251, %15 : vector<2x16xf32>
    %253 = tpu.concatenate %250, %232 in 1 : vector<2x32xf32>, vector<2x32xf32> -> vector<2x64xf32>
    %cst_57 = arith.constant dense<0.000000e+00> : vector<2x128xf32>
    %254 = tpu.matmul %253, %1, %cst_57 {dimension_numbers = #tpu.dot_dimension_numbers<[1], [0], [0], [1], [0, 0, 1, 1], [], []>} : vector<2x64xf32>, vector<64x128xf32>, vector<2x128xf32> -> vector<2x128xf32>
    %255 = arith.addf %254, %7 : vector<2x128xf32>
    %256 = arith.negf %255 : vector<2x128xf32>
    %257 = math.exp %256 : vector<2x128xf32>
    %cst_58 = arith.constant 1.000000e+00 : f32
    %258 = vector.broadcast %cst_58 : f32 to vector<2x128xf32>
    %259 = arith.addf %258, %257 : vector<2x128xf32>
    %260 = arith.divf %258, %259 : vector<2x128xf32>
    %261 = math.tanh %255 : vector<2x128xf32>
    %262 = vector.extract_strided_slice %260 {offsets = [0, 0], sizes = [2, 32], strides = [1, 1]} : vector<2x128xf32> to vector<2x32xf32>
    %263 = vector.extract_strided_slice %260 {offsets = [0, 32], sizes = [2, 32], strides = [1, 1]} : vector<2x128xf32> to vector<2x32xf32>
    %264 = vector.extract_strided_slice %261 {offsets = [0, 64], sizes = [2, 32], strides = [1, 1]} : vector<2x128xf32> to vector<2x32xf32>
    %265 = vector.extract_strided_slice %260 {offsets = [0, 96], sizes = [2, 32], strides = [1, 1]} : vector<2x128xf32> to vector<2x32xf32>
    %266 = arith.mulf %263, %230 : vector<2x32xf32>
    %267 = arith.mulf %262, %264 : vector<2x32xf32>
    %268 = arith.addf %266, %267 : vector<2x32xf32>
    %269 = math.tanh %268 : vector<2x32xf32>
    %270 = arith.mulf %265, %269 : vector<2x32xf32>
    %271 = tpu.concatenate %270, %250 in 1 : vector<2x32xf32>, vector<2x32xf32> -> vector<2x64xf32>
    %cst_59 = arith.constant dense<0.000000e+00> : vector<2x128xf32>
    %272 = tpu.matmul %271, %3, %cst_59 {dimension_numbers = #tpu.dot_dimension_numbers<[1], [0], [0], [1], [0, 0, 1, 1], [], []>} : vector<2x64xf32>, vector<64x128xf32>, vector<2x128xf32> -> vector<2x128xf32>
    %273 = arith.addf %272, %11 : vector<2x128xf32>
    %274 = arith.negf %273 : vector<2x128xf32>
    %275 = math.exp %274 : vector<2x128xf32>
    %cst_60 = arith.constant 1.000000e+00 : f32
    %276 = vector.broadcast %cst_60 : f32 to vector<2x128xf32>
    %277 = arith.addf %276, %275 : vector<2x128xf32>
    %278 = arith.divf %276, %277 : vector<2x128xf32>
    %279 = math.tanh %273 : vector<2x128xf32>
    %280 = vector.extract_strided_slice %278 {offsets = [0, 0], sizes = [2, 32], strides = [1, 1]} : vector<2x128xf32> to vector<2x32xf32>
    %281 = vector.extract_strided_slice %278 {offsets = [0, 32], sizes = [2, 32], strides = [1, 1]} : vector<2x128xf32> to vector<2x32xf32>
    %282 = vector.extract_strided_slice %279 {offsets = [0, 64], sizes = [2, 32], strides = [1, 1]} : vector<2x128xf32> to vector<2x32xf32>
    %283 = vector.extract_strided_slice %278 {offsets = [0, 96], sizes = [2, 32], strides = [1, 1]} : vector<2x128xf32> to vector<2x32xf32>
    %284 = arith.mulf %281, %248 : vector<2x32xf32>
    %285 = arith.mulf %280, %282 : vector<2x32xf32>
    %286 = arith.addf %284, %285 : vector<2x32xf32>
    %287 = math.tanh %286 : vector<2x32xf32>
    %288 = arith.mulf %283, %287 : vector<2x32xf32>
    %cst_61 = arith.constant dense<0.000000e+00> : vector<2x16xf32>
    %289 = tpu.matmul %288, %12, %cst_61 {dimension_numbers = #tpu.dot_dimension_numbers<[1], [0], [0], [1], [0, 0, 1, 1], [], []>} : vector<2x32xf32>, vector<32x16xf32>, vector<2x16xf32> -> vector<2x16xf32>
    %290 = arith.addf %289, %15 : vector<2x16xf32>
    %291 = tpu.concatenate %288, %270 in 1 : vector<2x32xf32>, vector<2x32xf32> -> vector<2x64xf32>
    %cst_62 = arith.constant dense<0.000000e+00> : vector<2x128xf32>
    %292 = tpu.matmul %291, %1, %cst_62 {dimension_numbers = #tpu.dot_dimension_numbers<[1], [0], [0], [1], [0, 0, 1, 1], [], []>} : vector<2x64xf32>, vector<64x128xf32>, vector<2x128xf32> -> vector<2x128xf32>
    %293 = arith.addf %292, %7 : vector<2x128xf32>
    %294 = arith.negf %293 : vector<2x128xf32>
    %295 = math.exp %294 : vector<2x128xf32>
    %cst_63 = arith.constant 1.000000e+00 : f32
    %296 = vector.broadcast %cst_63 : f32 to vector<2x128xf32>
    %297 = arith.addf %296, %295 : vector<2x128xf32>
    %298 = arith.divf %296, %297 : vector<2x128xf32>
    %299 = math.tanh %293 : vector<2x128xf32>
    %300 = vector.extract_strided_slice %298 {offsets = [0, 0], sizes = [2, 32], strides = [1, 1]} : vector<2x128xf32> to vector<2x32xf32>
    %301 = vector.extract_strided_slice %298 {offsets = [0, 32], sizes = [2, 32], strides = [1, 1]} : vector<2x128xf32> to vector<2x32xf32>
    %302 = vector.extract_strided_slice %299 {offsets = [0, 64], sizes = [2, 32], strides = [1, 1]} : vector<2x128xf32> to vector<2x32xf32>
    %303 = vector.extract_strided_slice %298 {offsets = [0, 96], sizes = [2, 32], strides = [1, 1]} : vector<2x128xf32> to vector<2x32xf32>
    %304 = arith.mulf %301, %268 : vector<2x32xf32>
    %305 = arith.mulf %300, %302 : vector<2x32xf32>
    %306 = arith.addf %304, %305 : vector<2x32xf32>
    %307 = math.tanh %306 : vector<2x32xf32>
    %308 = arith.mulf %303, %307 : vector<2x32xf32>
    %309 = tpu.concatenate %308, %288 in 1 : vector<2x32xf32>, vector<2x32xf32> -> vector<2x64xf32>
    %cst_64 = arith.constant dense<0.000000e+00> : vector<2x128xf32>
    %310 = tpu.matmul %309, %3, %cst_64 {dimension_numbers = #tpu.dot_dimension_numbers<[1], [0], [0], [1], [0, 0, 1, 1], [], []>} : vector<2x64xf32>, vector<64x128xf32>, vector<2x128xf32> -> vector<2x128xf32>
    %311 = arith.addf %310, %11 : vector<2x128xf32>
    %312 = arith.negf %311 : vector<2x128xf32>
    %313 = math.exp %312 : vector<2x128xf32>
    %cst_65 = arith.constant 1.000000e+00 : f32
    %314 = vector.broadcast %cst_65 : f32 to vector<2x128xf32>
    %315 = arith.addf %314, %313 : vector<2x128xf32>
    %316 = arith.divf %314, %315 : vector<2x128xf32>
    %317 = math.tanh %311 : vector<2x128xf32>
    %318 = vector.extract_strided_slice %316 {offsets = [0, 0], sizes = [2, 32], strides = [1, 1]} : vector<2x128xf32> to vector<2x32xf32>
    %319 = vector.extract_strided_slice %316 {offsets = [0, 32], sizes = [2, 32], strides = [1, 1]} : vector<2x128xf32> to vector<2x32xf32>
    %320 = vector.extract_strided_slice %317 {offsets = [0, 64], sizes = [2, 32], strides = [1, 1]} : vector<2x128xf32> to vector<2x32xf32>
    %321 = vector.extract_strided_slice %316 {offsets = [0, 96], sizes = [2, 32], strides = [1, 1]} : vector<2x128xf32> to vector<2x32xf32>
    %322 = arith.mulf %319, %286 : vector<2x32xf32>
    %323 = arith.mulf %318, %320 : vector<2x32xf32>
    %324 = arith.addf %322, %323 : vector<2x32xf32>
    %325 = math.tanh %324 : vector<2x32xf32>
    %326 = arith.mulf %321, %325 : vector<2x32xf32>
    %cst_66 = arith.constant dense<0.000000e+00> : vector<2x16xf32>
    %327 = tpu.matmul %326, %12, %cst_66 {dimension_numbers = #tpu.dot_dimension_numbers<[1], [0], [0], [1], [0, 0, 1, 1], [], []>} : vector<2x32xf32>, vector<32x16xf32>, vector<2x16xf32> -> vector<2x16xf32>
    %328 = arith.addf %327, %15 : vector<2x16xf32>
    %329 = tpu.concatenate %62, %100, %138, %176, %214, %252, %290, %328 in 1 : vector<2x16xf32>, vector<2x16xf32>, vector<2x16xf32>, vector<2x16xf32>, vector<2x16xf32>, vector<2x16xf32>, vector<2x16xf32>, vector<2x16xf32> -> vector<2x128xf32>
    %c0_67 = arith.constant 0 : index
    %c0_68 = arith.constant 0 : index
    %330 = vector.load %arg7[%c0_67, %c0_68] : memref<2x128xf32, #tpu.memory_space<vmem>>, vector<2x128xf32>
    tpu.vector_store %arg7[%c0_67, %c0_68], %329 {strides = array<i32>} : memref<2x128xf32, #tpu.memory_space<vmem>>, vector<2x128xf32>,
    return
  }
}

</mosaic_0001>

<llo_original>
// kernel: tpu_custom_call.1
$region0: #{tpu_custom_call.1}
  #allocation0 [shape = 'u32[]', space=smem, size = 0x4, offset = 0x4, fixed_abs, tag = 'smem constant byte address 0x4 - core index']
  #allocation1 [shape = 'u32[144,128]{1,0:T(1,128)}', space=vmem, size = 0x12000, scoped, tag = 'internal scratch']
  %s0 = inlined_call_operand.vmem [shape: f32[2,32], index: 0, kind: input, shape index: {}]
  %s1 = inlined_call_operand.vmem [shape: f32[2,2,32], index: 1, kind: input, shape index: {}]
  %s2 = inlined_call_operand.vmem [shape: f32[2,2,32], index: 2, kind: input, shape index: {}]
  %s3 = inlined_call_operand.hbm [shape: f32[2,64,128], index: 3, kind: input, shape index: {}]
  %s4 = inlined_call_operand.vmem [shape: f32[2,1,128], index: 4, kind: input, shape index: {}]
  %s5 = inlined_call_operand.vmem [shape: f32[32,16], index: 5, kind: input, shape index: {}]
  %s6 = inlined_call_operand.vmem [shape: f32[1,16], index: 6, kind: input, shape index: {}]
  %s7 = inlined_call_operand.hbm [shape: f32[2,128], index: 7, kind: output, shape index: {}]
  %s8 = sld [smem:[#allocation0]]
  $region42: #{tpu_custom_call.1} parent=0
    _
  %s10 = ssub.s32 1, %s8
  %s11 = scalar_select 0, %s10, %s8
  $region1: #{tpu_custom_call.1} parent=0
    #allocation2 [shape = 'u8[65536]{0}', space=vmem, size = 0x10000, scoped, tag = 'input window, operand 3, single buffered']
    #allocation3 [shape = 's32[1]{0}', space=sflag, size = 0x4, scoped, tag = 'scoped memory for tpu_custom_call.1']
    #allocation4 [shape = 's32[1]{0}', space=sflag, size = 0x4, scoped, tag = 'scoped memory for tpu_custom_call.1']
    #allocation5 [shape = 'u8[1024]{0}', space=vmem, size = 0x400, scoped, tag = 'output window, operand 0, single buffered']
    %12 = vsyncpa [#allocation3], 0
    %13 = vsyncpa [#allocation4], 0
    // Predicated region
    $region2: #{tpu_custom_call.1} parent=1 // pred_check
      _
    $region3: #{tpu_custom_call.1} parent=1 // pred_check_branch
      %15 = sbr.rel (0) target = $region5
    $region4: #{tpu_custom_call.1} parent=1 // pred_region
      _
    $region5: #{tpu_custom_call.1} parent=1 // pred_fallthru
      _
    // Predicated region
    $region6: #{tpu_custom_call.1} parent=1 // pred_check
      _
    $region7: #{tpu_custom_call.1} parent=1 // pred_check_branch
      %17 = sbr.rel (0) target = $region9
    $region8: #{tpu_custom_call.1} parent=1 // pred_region
      _
    $region9: #{tpu_custom_call.1} parent=1 // pred_fallthru
      _
    // Predicated region
    $region10: #{tpu_custom_call.1} parent=1 // pred_check
      _
    $region11: #{tpu_custom_call.1} parent=1 // pred_check_branch
      %19 = sbr.rel (0) target = $region13
    $region12: #{tpu_custom_call.1} parent=1 // pred_region
      _
    $region13: #{tpu_custom_call.1} parent=1 // pred_fallthru
      _
    // Predicated region
    $region14: #{tpu_custom_call.1} parent=1 // pred_check
      _
    $region15: #{tpu_custom_call.1} parent=1 // pred_check_branch
      %21 = sbr.rel (0) target = $region17
    $region16: #{tpu_custom_call.1} parent=1 // pred_region
      %s23 = ssub.s32 2048, 2048
      %24 = vsyncadd [#allocation3], %s23
      %s25 = sshll.u32 [#allocation2], 4
      %s26 = int_to_ptr.vmem [resolvable:$true] %s25
      %31 = dma.hbm_to_vmem [thread:$0]  %s3, 2048, %s26, [#allocation3], 128, 128, 8
    $region17: #{tpu_custom_call.1} parent=1 // pred_fallthru
      _
    // Predicated region
    $region18: #{tpu_custom_call.1} parent=1 // pred_check
      _
    $region19: #{tpu_custom_call.1} parent=1 // pred_check_branch
      %33 = sbr.rel (0) target = $region21
    $region20: #{tpu_custom_call.1} parent=1 // pred_region
      _
    $region21: #{tpu_custom_call.1} parent=1 // pred_fallthru
      _
    // Predicated region
    $region22: #{tpu_custom_call.1} parent=1 // pred_check
      _
    $region23: #{tpu_custom_call.1} parent=1 // pred_check_branch
      %35 = sbr.rel (0) target = $region25
    $region24: #{tpu_custom_call.1} parent=1 // pred_region
      _
    $region25: #{tpu_custom_call.1} parent=1 // pred_fallthru
      _
    // Predicated region
    $region26: #{tpu_custom_call.1} parent=1 // pred_check
      _
    $region27: #{tpu_custom_call.1} parent=1 // pred_check_branch
      %37 = sbr.rel (0) target = $region29
    $region28: #{tpu_custom_call.1} parent=1 // pred_region
      _
    $region29: #{tpu_custom_call.1} parent=1 // pred_fallthru
      _
    // Predicated region
    $region30: #{tpu_custom_call.1} parent=1 // pred_check
      _
    $region31: #{tpu_custom_call.1} parent=1 // pred_check_branch
      %39 = sbr.rel (0) target = $region33
    $region32: #{tpu_custom_call.1} parent=1 // pred_region
      %40 = dma.done [#allocation3], 2048
    $region33: #{tpu_custom_call.1} parent=1 // pred_fallthru
      _
    %v41 = vld [vmem:[#allocation2] sm:$0xff]
    %v42 = vld [vmem:[#allocation2 + $0x8] sm:$0xff]
    %v43 = vld [vmem:[#allocation2 + $0x10] sm:$0xff]
    %v44 = vld [vmem:[#allocation2 + $0x18] sm:$0xff]
    %v45 = vld [vmem:[#allocation2 + $0x20] sm:$0xff]
    %v46 = vld [vmem:[#allocation2 + $0x28] sm:$0xff]
    %v47 = vld [vmem:[#allocation2 + $0x30] sm:$0xff]
    %v48 = vld [vmem:[#allocation2 + $0x38] sm:$0xff]
    %s49 = scalar_lea.vmem [#allocation2], 64
    %v50 = vld [vmem:[%s49] sm:$0xff]
    %v51 = vld [vmem:[%s49 + $0x8] sm:$0xff]
    %v52 = vld [vmem:[%s49 + $0x10] sm:$0xff]
    %v53 = vld [vmem:[%s49 + $0x18] sm:$0xff]
    %v54 = vld [vmem:[%s49 + $0x20] sm:$0xff]
    %v55 = vld [vmem:[%s49 + $0x28] sm:$0xff]
    %v56 = vld [vmem:[%s49 + $0x30] sm:$0xff]
    %v57 = vld [vmem:[%s49 + $0x38] sm:$0xff]
    %v58 = vld [vmem:[%s4] sm:$0x1]
    %v60 = vlaneseq
    %v61 = vshrl.u32 %v60, 7
    %v62 = vsub.s32 0, %v61
    %v63 = vrot.slane %v58, %v62
    %s65 = scalar_lea.vmem %s4, 1
    %v66 = vld [vmem:[%s65] sm:$0x1]
    %v68 = vlaneseq
    %v69 = vshrl.u32 %v68, 7
    %v70 = vsub.s32 0, %v69
    %v71 = vrot.slane %v66, %v70
    %v73 = vld [vmem:[%s5] sm:$0xff]
    %v74 = vld [vmem:[%s5 + $0x8] sm:$0xff]
    %v75 = vld [vmem:[%s5 + $0x10] sm:$0xff]
    %v76 = vld [vmem:[%s5 + $0x18] sm:$0xff]
    %v77 = vld [vmem:[%s6] sm:$0x1]
    %v79 = vlaneseq
    %v80 = vshrl.u32 %v79, 7
    %v81 = vsub.s32 0, %v80
    %v82 = vrot.slane %v77, %v81
    %v84 = vld [vmem:[%s0] sm:$0x3]
    %v85 = vld [vmem:[%s1] sm:$0x3]
    %s86 = scalar_lea.vmem %s1, 2
    %v87 = vld [vmem:[%s86] sm:$0x3]
    %v88 = vld [vmem:[%s2] sm:$0x3]
    %s89 = scalar_lea.vmem %s2, 2
    %v90 = vld [vmem:[%s89] sm:$0x3]
    %92 = vrot.lane.b32.xlu0 %v85, 32
    %v93 = vpop.permute.xlu0 %92
    %vm95 = vcmask 261120
    %v96 = vsel %vm95, %v84, %v93
    %vm97 = vcmask 523264
    %v99 = vsel %vm97, %v96, 0
    %101 = vmatprep.subr.mxu0 0.0
    %102 = vmatpush1.msra.mxu0 %v41
    %103 = vmatprep.subr.mxu0 0.0
    %104 = vmatpush1.msra.mxu0 %v42
    %105 = vmatprep.subr.mxu0 0.0
    %106 = vmatpush1.msra.mxu0 %v43
    %107 = vmatprep.subr.mxu0 0.0
    %108 = vmatpush1.msra.mxu0 %v44
    %109 = vmatprep.subr.mxu0 0.0
    %110 = vmatpush1.msra.mxu0 %v45
    %111 = vmatprep.subr.mxu0 0.0
    %112 = vmatpush1.msra.mxu0 %v46
    %113 = vmatprep.subr.mxu0 0.0
    %114 = vmatpush1.msra.mxu0 %v47
    %115 = vmatprep.subr.mxu0 0.0
    %116 = vmatpush1.msra.mxu0 %v48
    %117 = vmatprep.subr.mxu0 0.0
    %118 = vmatpush1.msra.mxu0 0.0
    %119 = vmatprep.subr.mxu0 0.0
    %120 = vmatpush1.msra.mxu0 0.0
    %121 = vmatprep.subr.mxu0 0.0
    %122 = vmatpush1.msra.mxu0 0.0
    %123 = vmatprep.subr.mxu0 0.0
    %124 = vmatpush1.msra.mxu0 0.0
    %125 = vmatprep.subr.mxu0 0.0
    %126 = vmatpush1.msra.mxu0 0.0
    %127 = vmatprep.subr.mxu0 0.0
    %128 = vmatpush1.msra.mxu0 0.0
    %129 = vmatprep.subr.mxu0 0.0
    %130 = vmatpush1.msra.mxu0 0.0
    %131 = vmatprep.subr.mxu0 0.0
    %132 = vmatpush1.msra.mxu0 0.0
    %133 = vmatprep.subr.mxu0 0.0
    %134 = vmatpush1.msra.mxu0 0.0
    %135 = vmatprep.subr.mxu0 0.0
    %136 = vmatpush1.msra.mxu0 0.0
    %137 = vmatprep.subr.mxu0 0.0
    %138 = vmatpush1.msra.mxu0 0.0
    %139 = vmatprep.subr.mxu0 0.0
    %140 = vmatpush1.msra.mxu0 0.0
    %141 = vmatprep.subr.mxu0 0.0
    %142 = vmatpush1.msra.mxu0 0.0
    %143 = vmatprep.subr.mxu0 0.0
    %144 = vmatpush1.msra.mxu0 0.0
    %145 = vmatprep.subr.mxu0 0.0
    %146 = vmatpush1.msra.mxu0 0.0
    %147 = vmatprep.subr.mxu0 0.0
    %148 = vmatpush1.msra.mxu0 0.0
    %149 = vmatprep.subr.mxu0 0.0
    %150 = vmatpush1.msra.mxu0 0.0
    %151 = vmatprep.subr.mxu0 0.0
    %152 = vmatpush1.msra.mxu0 0.0
    %153 = vmatprep.subr.mxu0 0.0
    %154 = vmatpush1.msra.mxu0 0.0
    %155 = vmatprep.subr.mxu0 0.0
    %156 = vmatpush1.msra.mxu0 0.0
    %157 = vmatprep.subr.mxu0 0.0
    %158 = vmatpush1.msra.mxu0 0.0
    %159 = vmatprep.subr.mxu0 0.0
    %160 = vmatpush1.msra.mxu0 0.0
    %161 = vmatprep.subr.mxu0 0.0
    %162 = vmatpush1.msra.mxu0 0.0
    %163 = vmatprep.subr.mxu0 0.0
    %164 = vmatpush1.msra.mxu0 0.0
    %165 = vmatprep.mubr.f32.mxu0 0.0
    %166 = vmatmul.mubr.f32.gmra.mrb[0].mxu0 %v99
    %v167 = vpop.f32.mrb[0].mxu0
    %v168 = vadd.f32 %v63, %v167
    %v169 = vpop.f32.mrb[0].mxu0
    %170 = vdwg.mxu0
    %v171 = vxor.u32 %v168, 2147483648
    %v172 = vmul.f32 %v171, 1.442695
    %v173 = vpow.pop %v172
    %v174 = vadd.f32 %v173, 1.0
    %v175 = vrcp.pop %v174
    %v176 = vmul.f32 1.0, %v175
    %v177 = vtanh.pop %v168
    %179 = vrot.lane.b32.xlu0 %v88, 32
    %v180 = vpop.permute.xlu0 %179
    %v182 = vmul.f32 %v176, %v180
    %184 = vrot.lane.b32.xlu0 %v177, 64
    %v185 = vpop.permute.xlu0 %184
    %v187 = vmul.f32 %v176, %v185
    %189 = vrot.lane.b32.xlu0 %v187, 32
    %v190 = vpop.permute.xlu0 %189
    %v192 = vadd.f32 %v182, %v190
    %v193 = vtanh.pop %v192
    %195 = vrot.lane.b32.xlu0 %v193, 64
    %v196 = vpop.permute.xlu0 %195
    %v198 = vmul.f32 %v176, %v196
    %200 = vrot.lane.b32.xlu0 %v198, 32
    %v201 = vpop.permute.xlu0 %200
    %204 = vrot.lane.b32.xlu0 %v87, 32
    %v205 = vpop.permute.xlu0 %204
    %v207 = vsel %vm95, %v201, %v205
    %v209 = vsel %vm97, %v207, 0
    %211 = vmatprep.subr.mxu0 0.0
    %212 = vmatpush1.msra.mxu0 %v50
    %213 = vmatprep.subr.mxu0 0.0
    %214 = vmatpush1.msra.mxu0 %v51
    %215 = vmatprep.subr.mxu0 0.0
    %216 = vmatpush1.msra.mxu0 %v52
    %217 = vmatprep.subr.mxu0 0.0
    %218 = vmatpush1.msra.mxu0 %v53
    %219 = vmatprep.subr.mxu0 0.0
    %220 = vmatpush1.msra.mxu0 %v54
    %221 = vmatprep.subr.mxu0 0.0
    %222 = vmatpush1.msra.mxu0 %v55
    %223 = vmatprep.subr.mxu0 0.0
    %224 = vmatpush1.msra.mxu0 %v56
    %225 = vmatprep.subr.mxu0 0.0
    %226 = vmatpush1.msra.mxu0 %v57
    %227 = vmatprep.subr.mxu0 0.0
    %228 = vmatpush1.msra.mxu0 0.0
    %229 = vmatprep.subr.mxu0 0.0
    %230 = vmatpush1.msra.mxu0 0.0
    %231 = vmatprep.subr.mxu0 0.0
    %232 = vmatpush1.msra.mxu0 0.0
    %233 = vmatprep.subr.mxu0 0.0
    %234 = vmatpush1.msra.mxu0 0.0
    %235 = vmatprep.subr.mxu0 0.0
    %236 = vmatpush1.msra.mxu0 0.0
    %237 = vmatprep.subr.mxu0 0.0
    %238 = vmatpush1.msra.mxu0 0.0
    %239 = vmatprep.subr.mxu0 0.0
    %240 = vmatpush1.msra.mxu0 0.0
    %241 = vmatprep.subr.mxu0 0.0
    %242 = vmatpush1.msra.mxu0 0.0
    %243 = vmatprep.subr.mxu0 0.0
    %244 = vmatpush1.msra.mxu0 0.0
    %245 = vmatprep.subr.mxu0 0.0
    %246 = vmatpush1.msra.mxu0 0.0
    %247 = vmatprep.subr.mxu0 0.0
    %248 = vmatpush1.msra.mxu0 0.0
    %249 = vmatprep.subr.mxu0 0.0
    %250 = vmatpush1.msra.mxu0 0.0
    %251 = vmatprep.subr.mxu0 0.0
    %252 = vmatpush1.msra.mxu0 0.0
    %253 = vmatprep.subr.mxu0 0.0
    %254 = vmatpush1.msra.mxu0 0.0
    %255 = vmatprep.subr.mxu0 0.0
    %256 = vmatpush1.msra.mxu0 0.0
    %257 = vmatprep.subr.mxu0 0.0
    %258 = vmatpush1.msra.mxu0 0.0
    %259 = vmatprep.subr.mxu0 0.0
    %260 = vmatpush1.msra.mxu0 0.0
    %261 = vmatprep.subr.mxu0 0.0
    %262 = vmatpush1.msra.mxu0 0.0
    %263 = vmatprep.subr.mxu0 0.0
    %264 = vmatpush1.msra.mxu0 0.0
    %265 = vmatprep.subr.mxu0 0.0
    %266 = vmatpush1.msra.mxu0 0.0
    %267 = vmatprep.subr.mxu0 0.0
    %268 = vmatpush1.msra.mxu0 0.0
    %269 = vmatprep.subr.mxu0 0.0
    %270 = vmatpush1.msra.mxu0 0.0
    %271 = vmatprep.subr.mxu0 0.0
    %272 = vmatpush1.msra.mxu0 0.0
    %273 = vmatprep.subr.mxu0 0.0
    %274 = vmatpush1.msra.mxu0 0.0
    %275 = vmatprep.mubr.f32.mxu0 0.0
    %276 = vmatmul.mubr.f32.gmra.mrb[0].mxu0 %v209
    %v277 = vpop.f32.mrb[0].mxu0
    %v278 = vadd.f32 %v71, %v277
    %v279 = vpop.f32.mrb[0].mxu0
    %280 = vdwg.mxu0
    %v281 = vxor.u32 %v278, 2147483648
    %v282 = vmul.f32 %v281, 1.442695
    %v283 = vpow.pop %v282
    %v284 = vadd.f32 %v283, 1.0
    %v285 = vrcp.pop %v284
    %v286 = vmul.f32 1.0, %v285
    %v287 = vtanh.pop %v278
    %289 = vrot.lane.b32.xlu0 %v90, 32
    %v290 = vpop.permute.xlu0 %289
    %v292 = vmul.f32 %v286, %v290
    %294 = vrot.lane.b32.xlu0 %v287, 64
    %v295 = vpop.permute.xlu0 %294
    %v297 = vmul.f32 %v286, %v295
    %299 = vrot.lane.b32.xlu0 %v297, 32
    %v300 = vpop.permute.xlu0 %299
    %v302 = vadd.f32 %v292, %v300
    %v303 = vtanh.pop %v302
    %305 = vrot.lane.b32.xlu0 %v303, 64
    %v306 = vpop.permute.xlu0 %305
    %v308 = vmul.f32 %v286, %v306
    %310 = vrot.lane.b32.xlu0 %v308, 32
    %v311 = vpop.permute.xlu0 %310
    %v312 = vsel %vm95, %v311, 0
    %314 = vmatprep.subr.mxu0 0.0
    %315 = vmatpush1.msra.mxu0 %v73
    %316 = vmatprep.subr.mxu0 0.0
    %317 = vmatpush1.msra.mxu0 %v74
    %318 = vmatprep.subr.mxu0 0.0
    %319 = vmatpush1.msra.mxu0 %v75
    %320 = vmatprep.subr.mxu0 0.0
    %321 = vmatpush1.msra.mxu0 %v76
    %322 = vmatprep.subr.mxu0 0.0
    %323 = vmatpush1.msra.mxu0 0.0
    %324 = vmatprep.subr.mxu0 0.0
    %325 = vmatpush1.msra.mxu0 0.0
    %326 = vmatprep.subr.mxu0 0.0
    %327 = vmatpush1.msra.mxu0 0.0
    %328 = vmatprep.subr.mxu0 0.0
    %329 = vmatpush1.msra.mxu0 0.0
    %330 = vmatprep.subr.mxu0 0.0
    %331 = vmatpush1.msra.mxu0 0.0
    %332 = vmatprep.subr.mxu0 0.0
    %333 = vmatpush1.msra.mxu0 0.0
    %334 = vmatprep.subr.mxu0 0.0
    %335 = vmatpush1.msra.mxu0 0.0
    %336 = vmatprep.subr.mxu0 0.0
    %337 = vmatpush1.msra.mxu0 0.0
    %338 = vmatprep.subr.mxu0 0.0
    %339 = vmatpush1.msra.mxu0 0.0
    %340 = vmatprep.subr.mxu0 0.0
    %341 = vmatpush1.msra.mxu0 0.0
    %342 = vmatprep.subr.mxu0 0.0
    %343 = vmatpush1.msra.mxu0 0.0
    %344 = vmatprep.subr.mxu0 0.0
    %345 = vmatpush1.msra.mxu0 0.0
    %346 = vmatprep.subr.mxu0 0.0
    %347 = vmatpush1.msra.mxu0 0.0
    %348 = vmatprep.subr.mxu0 0.0
    %349 = vmatpush1.msra.mxu0 0.0
    %350 = vmatprep.subr.mxu0 0.0
    %351 = vmatpush1.msra.mxu0 0.0
    %352 = vmatprep.subr.mxu0 0.0
    %353 = vmatpush1.msra.mxu0 0.0
    %354 = vmatprep.subr.mxu0 0.0
    %355 = vmatpush1.msra.mxu0 0.0
    %356 = vmatprep.subr.mxu0 0.0
    %357 = vmatpush1.msra.mxu0 0.0
    %358 = vmatprep.subr.mxu0 0.0
    %359 = vmatpush1.msra.mxu0 0.0
    %360 = vmatprep.subr.mxu0 0.0
    %361 = vmatpush1.msra.mxu0 0.0
    %362 = vmatprep.subr.mxu0 0.0
    %363 = vmatpush1.msra.mxu0 0.0
    %364 = vmatprep.subr.mxu0 0.0
    %365 = vmatpush1.msra.mxu0 0.0
    %366 = vmatprep.subr.mxu0 0.0
    %367 = vmatpush1.msra.mxu0 0.0
    %368 = vmatprep.subr.mxu0 0.0
    %369 = vmatpush1.msra.mxu0 0.0
    %370 = vmatprep.subr.mxu0 0.0
    %371 = vmatpush1.msra.mxu0 0.0
    %372 = vmatprep.subr.mxu0 0.0
    %373 = vmatpush1.msra.mxu0 0.0
    %374 = vmatprep.subr.mxu0 0.0
    %375 = vmatpush1.msra.mxu0 0.0
    %376 = vmatprep.subr.mxu0 0.0
    %377 = vmatpush1.msra.mxu0 0.0
    %378 = vmatprep.mubr.f32.mxu0 0.0
    %379 = vmatmul.mubr.f32.gmra.mrb[0].mxu0 %v312
    %v380 = vpop.f32.mrb[0].mxu0
    %v381 = vadd.f32 %v82, %v380
    %v382 = vpop.f32.mrb[0].mxu0
    %383 = vdwg.mxu0
    %385 = vrot.lane.b32.xlu0 %v198, 64
    %v386 = vpop.permute.xlu0 %385
    %v388 = vsel %vm95, %v311, %v386
    %v390 = vsel %vm97, %v388, 0
    %392 = vmatprep.subr.mxu0 0.0
    %393 = vmatpush1.msra.mxu0 %v41
    %394 = vmatprep.subr.mxu0 0.0
    %395 = vmatpush1.msra.mxu0 %v42
    %396 = vmatprep.subr.mxu0 0.0
    %397 = vmatpush1.msra.mxu0 %v43
    %398 = vmatprep.subr.mxu0 0.0
    %399 = vmatpush1.msra.mxu0 %v44
    %400 = vmatprep.subr.mxu0 0.0
    %401 = vmatpush1.msra.mxu0 %v45
    %402 = vmatprep.subr.mxu0 0.0
    %403 = vmatpush1.msra.mxu0 %v46
    %404 = vmatprep.subr.mxu0 0.0
    %405 = vmatpush1.msra.mxu0 %v47
    %406 = vmatprep.subr.mxu0 0.0
    %407 = vmatpush1.msra.mxu0 %v48
    %408 = vmatprep.subr.mxu0 0.0
    %409 = vmatpush1.msra.mxu0 0.0
    %410 = vmatprep.subr.mxu0 0.0
    %411 = vmatpush1.msra.mxu0 0.0
    %412 = vmatprep.subr.mxu0 0.0
    %413 = vmatpush1.msra.mxu0 0.0
    %414 = vmatprep.subr.mxu0 0.0
    %415 = vmatpush1.msra.mxu0 0.0
    %416 = vmatprep.subr.mxu0 0.0
    %417 = vmatpush1.msra.mxu0 0.0
    %418 = vmatprep.subr.mxu0 0.0
    %419 = vmatpush1.msra.mxu0 0.0
    %420 = vmatprep.subr.mxu0 0.0
    %421 = vmatpush1.msra.mxu0 0.0
    %422 = vmatprep.subr.mxu0 0.0
    %423 = vmatpush1.msra.mxu0 0.0
    %424 = vmatprep.subr.mxu0 0.0
    %425 = vmatpush1.msra.mxu0 0.0
    %426 = vmatprep.subr.mxu0 0.0
    %427 = vmatpush1.msra.mxu0 0.0
    %428 = vmatprep.subr.mxu0 0.0
    %429 = vmatpush1.msra.mxu0 0.0
    %430 = vmatprep.subr.mxu0 0.0
    %431 = vmatpush1.msra.mxu0 0.0
    %432 = vmatprep.subr.mxu0 0.0
    %433 = vmatpush1.msra.mxu0 0.0
    %434 = vmatprep.subr.mxu0 0.0
    %435 = vmatpush1.msra.mxu0 0.0
    %436 = vmatprep.subr.mxu0 0.0
    %437 = vmatpush1.msra.mxu0 0.0
    %438 = vmatprep.subr.mxu0 0.0
    %439 = vmatpush1.msra.mxu0 0.0
    %440 = vmatprep.subr.mxu0 0.0
    %441 = vmatpush1.msra.mxu0 0.0
    %442 = vmatprep.subr.mxu0 0.0
    %443 = vmatpush1.msra.mxu0 0.0
    %444 = vmatprep.subr.mxu0 0.0
    %445 = vmatpush1.msra.mxu0 0.0
    %446 = vmatprep.subr.mxu0 0.0
    %447 = vmatpush1.msra.mxu0 0.0
    %448 = vmatprep.subr.mxu0 0.0
    %449 = vmatpush1.msra.mxu0 0.0
    %450 = vmatprep.subr.mxu0 0.0
    %451 = vmatpush1.msra.mxu0 0.0
    %452 = vmatprep.subr.mxu0 0.0
    %453 = vmatpush1.msra.mxu0 0.0
    %454 = vmatprep.subr.mxu0 0.0
    %455 = vmatpush1.msra.mxu0 0.0
    %456 = vmatprep.mubr.f32.mxu0 0.0
    %457 = vmatmul.mubr.f32.gmra.mrb[0].mxu0 %v390
    %v458 = vpop.f32.mrb[0].mxu0
    %v459 = vadd.f32 %v63, %v458
    %v460 = vpop.f32.mrb[0].mxu0
    %461 = vdwg.mxu0
    %v462 = vxor.u32 %v459, 2147483648
    %v463 = vmul.f32 %v462, 1.442695
    %v464 = vpow.pop %v463
    %v465 = vadd.f32 %v464, 1.0
    %v466 = vrcp.pop %v465
    %v467 = vmul.f32 1.0, %v466
    %v468 = vtanh.pop %v459
    %v469 = vmul.f32 %v467, %v192
    %471 = vrot.lane.b32.xlu0 %v468, 64
    %v472 = vpop.permute.xlu0 %471
    %v474 = vmul.f32 %v467, %v472
    %476 = vrot.lane.b32.xlu0 %v474, 32
    %v477 = vpop.permute.xlu0 %476
    %v479 = vadd.f32 %v469, %v477
    %v480 = vtanh.pop %v479
    %482 = vrot.lane.b32.xlu0 %v480, 64
    %v483 = vpop.permute.xlu0 %482
    %v485 = vmul.f32 %v467, %v483
    %487 = vrot.lane.b32.xlu0 %v485, 32
    %v488 = vpop.permute.xlu0 %487
    %490 = vrot.lane.b32.xlu0 %v308, 64
    %v491 = vpop.permute.xlu0 %490
    %v493 = vsel %vm95, %v488, %v491
    %v495 = vsel %vm97, %v493, 0
    %497 = vmatprep.subr.mxu0 0.0
    %498 = vmatpush1.msra.mxu0 %v50
    %499 = vmatprep.subr.mxu0 0.0
    %500 = vmatpush1.msra.mxu0 %v51
    %501 = vmatprep.subr.mxu0 0.0
    %502 = vmatpush1.msra.mxu0 %v52
    %503 = vmatprep.subr.mxu0 0.0
    %504 = vmatpush1.msra.mxu0 %v53
    %505 = vmatprep.subr.mxu0 0.0
    %506 = vmatpush1.msra.mxu0 %v54
    %507 = vmatprep.subr.mxu0 0.0
    %508 = vmatpush1.msra.mxu0 %v55
    %509 = vmatprep.subr.mxu0 0.0
    %510 = vmatpush1.msra.mxu0 %v56
    %511 = vmatprep.subr.mxu0 0.0
    %512 = vmatpush1.msra.mxu0 %v57
    %513 = vmatprep.subr.mxu0 0.0
    %514 = vmatpush1.msra.mxu0 0.0
    %515 = vmatprep.subr.mxu0 0.0
    %516 = vmatpush1.msra.mxu0 0.0
    %517 = vmatprep.subr.mxu0 0.0
    %518 = vmatpush1.msra.mxu0 0.0
    %519 = vmatprep.subr.mxu0 0.0
    %520 = vmatpush1.msra.mxu0 0.0
    %521 = vmatprep.subr.mxu0 0.0
    %522 = vmatpush1.msra.mxu0 0.0
    %523 = vmatprep.subr.mxu0 0.0
    %524 = vmatpush1.msra.mxu0 0.0
    %525 = vmatprep.subr.mxu0 0.0
    %526 = vmatpush1.msra.mxu0 0.0
    %527 = vmatprep.subr.mxu0 0.0
    %528 = vmatpush1.msra.mxu0 0.0
    %529 = vmatprep.subr.mxu0 0.0
    %530 = vmatpush1.msra.mxu0 0.0
    %531 = vmatprep.subr.mxu0 0.0
    %532 = vmatpush1.msra.mxu0 0.0
    %533 = vmatprep.subr.mxu0 0.0
    %534 = vmatpush1.msra.mxu0 0.0
    %535 = vmatprep.subr.mxu0 0.0
    %536 = vmatpush1.msra.mxu0 0.0
    %537 = vmatprep.subr.mxu0 0.0
    %538 = vmatpush1.msra.mxu0 0.0
    %539 = vmatprep.subr.mxu0 0.0
    %540 = vmatpush1.msra.mxu0 0.0
    %541 = vmatprep.subr.mxu0 0.0
    %542 = vmatpush1.msra.mxu0 0.0
    %543 = vmatprep.subr.mxu0 0.0
    %544 = vmatpush1.msra.mxu0 0.0
    %545 = vmatprep.subr.mxu0 0.0
    %546 = vmatpush1.msra.mxu0 0.0
    %547 = vmatprep.subr.mxu0 0.0
    %548 = vmatpush1.msra.mxu0 0.0
    %549 = vmatprep.subr.mxu0 0.0
    %550 = vmatpush1.msra.mxu0 0.0
    %551 = vmatprep.subr.mxu0 0.0
    %552 = vmatpush1.msra.mxu0 0.0
    %553 = vmatprep.subr.mxu0 0.0
    %554 = vmatpush1.msra.mxu0 0.0
    %555 = vmatprep.subr.mxu0 0.0
    %556 = vmatpush1.msra.mxu0 0.0
    %557 = vmatprep.subr.mxu0 0.0
    %558 = vmatpush1.msra.mxu0 0.0
    %559 = vmatprep.subr.mxu0 0.0
    %560 = vmatpush1.msra.mxu0 0.0
    %561 = vmatprep.mubr.f32.mxu0 0.0
    %562 = vmatmul.mubr.f32.gmra.mrb[0].mxu0 %v495
    %v563 = vpop.f32.mrb[0].mxu0
    %v564 = vadd.f32 %v71, %v563
    %v565 = vpop.f32.mrb[0].mxu0
    %566 = vdwg.mxu0
    %v567 = vxor.u32 %v564, 2147483648
    %v568 = vmul.f32 %v567, 1.442695
    %v569 = vpow.pop %v568
    %v570 = vadd.f32 %v569, 1.0
    %v571 = vrcp.pop %v570
    %v572 = vmul.f32 1.0, %v571
    %v573 = vtanh.pop %v564
    %v574 = vmul.f32 %v572, %v302
    %576 = vrot.lane.b32.xlu0 %v573, 64
    %v577 = vpop.permute.xlu0 %576
    %v579 = vmul.f32 %v572, %v577
    %581 = vrot.lane.b32.xlu0 %v579, 32
    %v582 = vpop.permute.xlu0 %581
    %v584 = vadd.f32 %v574, %v582
    %v585 = vtanh.pop %v584
    %587 = vrot.lane.b32.xlu0 %v585, 64
    %v588 = vpop.permute.xlu0 %587
    %v590 = vmul.f32 %v572, %v588
    %592 = vrot.lane.b32.xlu0 %v590, 32
    %v593 = vpop.permute.xlu0 %592
    %v594 = vsel %vm95, %v593, 0
    %596 = vmatprep.subr.mxu0 0.0
    %597 = vmatpush1.msra.mxu0 %v73
    %598 = vmatprep.subr.mxu0 0.0
    %599 = vmatpush1.msra.mxu0 %v74
    %600 = vmatprep.subr.mxu0 0.0
    %601 = vmatpush1.msra.mxu0 %v75
    %602 = vmatprep.subr.mxu0 0.0
    %603 = vmatpush1.msra.mxu0 %v76
    %604 = vmatprep.subr.mxu0 0.0
    %605 = vmatpush1.msra.mxu0 0.0
    %606 = vmatprep.subr.mxu0 0.0
    %607 = vmatpush1.msra.mxu0 0.0
    %608 = vmatprep.subr.mxu0 0.0
    %609 = vmatpush1.msra.mxu0 0.0
    %610 = vmatprep.subr.mxu0 0.0
    %611 = vmatpush1.msra.mxu0 0.0
    %612 = vmatprep.subr.mxu0 0.0
    %613 = vmatpush1.msra.mxu0 0.0
    %614 = vmatprep.subr.mxu0 0.0
    %615 = vmatpush1.msra.mxu0 0.0
    %616 = vmatprep.subr.mxu0 0.0
    %617 = vmatpush1.msra.mxu0 0.0
    %618 = vmatprep.subr.mxu0 0.0
    %619 = vmatpush1.msra.mxu0 0.0
    %620 = vmatprep.subr.mxu0 0.0
    %621 = vmatpush1.msra.mxu0 0.0
    %622 = vmatprep.subr.mxu0 0.0
    %623 = vmatpush1.msra.mxu0 0.0
    %624 = vmatprep.subr.mxu0 0.0
    %625 = vmatpush1.msra.mxu0 0.0
    %626 = vmatprep.subr.mxu0 0.0
    %627 = vmatpush1.msra.mxu0 0.0
    %628 = vmatprep.subr.mxu0 0.0
    %629 = vmatpush1.msra.mxu0 0.0
    %630 = vmatprep.subr.mxu0 0.0
    %631 = vmatpush1.msra.mxu0 0.0
    %632 = vmatprep.subr.mxu0 0.0
    %633 = vmatpush1.msra.mxu0 0.0
    %634 = vmatprep.subr.mxu0 0.0
    %635 = vmatpush1.msra.mxu0 0.0
    %636 = vmatprep.subr.mxu0 0.0
    %637 = vmatpush1.msra.mxu0 0.0
    %638 = vmatprep.subr.mxu0 0.0
    %639 = vmatpush1.msra.mxu0 0.0
    %640 = vmatprep.subr.mxu0 0.0
    %641 = vmatpush1.msra.mxu0 0.0
    %642 = vmatprep.subr.mxu0 0.0
    %643 = vmatpush1.msra.mxu0 0.0
    %644 = vmatprep.subr.mxu0 0.0
    %645 = vmatpush1.msra.mxu0 0.0
    %646 = vmatprep.subr.mxu0 0.0
    %647 = vmatpush1.msra.mxu0 0.0
    %648 = vmatprep.subr.mxu0 0.0
    %649 = vmatpush1.msra.mxu0 0.0
    %650 = vmatprep.subr.mxu0 0.0
    %651 = vmatpush1.msra.mxu0 0.0
    %652 = vmatprep.subr.mxu0 0.0
    %653 = vmatpush1.msra.mxu0 0.0
    %654 = vmatprep.subr.mxu0 0.0
    %655 = vmatpush1.msra.mxu0 0.0
    %656 = vmatprep.subr.mxu0 0.0
    %657 = vmatpush1.msra.mxu0 0.0
    %658 = vmatprep.subr.mxu0 0.0
    %659 = vmatpush1.msra.mxu0 0.0
    %660 = vmatprep.mubr.f32.mxu0 0.0
    %661 = vmatmul.mubr.f32.gmra.mrb[0].mxu0 %v594
    %v662 = vpop.f32.mrb[0].mxu0
    %v663 = vadd.f32 %v82, %v662
    %v664 = vpop.f32.mrb[0].mxu0
    %665 = vdwg.mxu0
    %667 = vrot.lane.b32.xlu0 %v485, 64
    %v668 = vpop.permute.xlu0 %667
    %v670 = vsel %vm95, %v593, %v668
    %v672 = vsel %vm97, %v670, 0
    %674 = vmatprep.subr.mxu0 0.0
    %675 = vmatpush1.msra.mxu0 %v41
    %676 = vmatprep.subr.mxu0 0.0
    %677 = vmatpush1.msra.mxu0 %v42
    %678 = vmatprep.subr.mxu0 0.0
    %679 = vmatpush1.msra.mxu0 %v43
    %680 = vmatprep.subr.mxu0 0.0
    %681 = vmatpush1.msra.mxu0 %v44
    %682 = vmatprep.subr.mxu0 0.0
    %683 = vmatpush1.msra.mxu0 %v45
    %684 = vmatprep.subr.mxu0 0.0
    %685 = vmatpush1.msra.mxu0 %v46
    %686 = vmatprep.subr.mxu0 0.0
    %687 = vmatpush1.msra.mxu0 %v47
    %688 = vmatprep.subr.mxu0 0.0
    %689 = vmatpush1.msra.mxu0 %v48
    %690 = vmatprep.subr.mxu0 0.0
    %691 = vmatpush1.msra.mxu0 0.0
    %692 = vmatprep.subr.mxu0 0.0
    %693 = vmatpush1.msra.mxu0 0.0
    %694 = vmatprep.subr.mxu0 0.0
    %695 = vmatpush1.msra.mxu0 0.0
    %696 = vmatprep.subr.mxu0 0.0
    %697 = vmatpush1.msra.mxu0 0.0
    %698 = vmatprep.subr.mxu0 0.0
    %699 = vmatpush1.msra.mxu0 0.0
    %700 = vmatprep.subr.mxu0 0.0
    %701 = vmatpush1.msra.mxu0 0.0
    %702 = vmatprep.subr.mxu0 0.0
    %703 = vmatpush1.msra.mxu0 0.0
    %704 = vmatprep.subr.mxu0 0.0
    %705 = vmatpush1.msra.mxu0 0.0
    %706 = vmatprep.subr.mxu0 0.0
    %707 = vmatpush1.msra.mxu0 0.0
    %708 = vmatprep.subr.mxu0 0.0
    %709 = vmatpush1.msra.mxu0 0.0
    %710 = vmatprep.subr.mxu0 0.0
    %711 = vmatpush1.msra.mxu0 0.0
    %712 = vmatprep.subr.mxu0 0.0
    %713 = vmatpush1.msra.mxu0 0.0
    %714 = vmatprep.subr.mxu0 0.0
    %715 = vmatpush1.msra.mxu0 0.0
    %716 = vmatprep.subr.mxu0 0.0
    %717 = vmatpush1.msra.mxu0 0.0
    %718 = vmatprep.subr.mxu0 0.0
    %719 = vmatpush1.msra.mxu0 0.0
    %720 = vmatprep.subr.mxu0 0.0
    %721 = vmatpush1.msra.mxu0 0.0
    %722 = vmatprep.subr.mxu0 0.0
    %723 = vmatpush1.msra.mxu0 0.0
    %724 = vmatprep.subr.mxu0 0.0
    %725 = vmatpush1.msra.mxu0 0.0
    %726 = vmatprep.subr.mxu0 0.0
    %727 = vmatpush1.msra.mxu0 0.0
    %728 = vmatprep.subr.mxu0 0.0
    %729 = vmatpush1.msra.mxu0 0.0
    %730 = vmatprep.subr.mxu0 0.0
    %731 = vmatpush1.msra.mxu0 0.0
    %732 = vmatprep.subr.mxu0 0.0
    %733 = vmatpush1.msra.mxu0 0.0
    %734 = vmatprep.subr.mxu0 0.0
    %735 = vmatpush1.msra.mxu0 0.0
    %736 = vmatprep.subr.mxu0 0.0
    %737 = vmatpush1.msra.mxu0 0.0
    %738 = vmatprep.mubr.f32.mxu0 0.0
    %739 = vmatmul.mubr.f32.gmra.mrb[0].mxu0 %v672
    %v740 = vpop.f32.mrb[0].mxu0
    %v741 = vadd.f32 %v63, %v740
    %v742 = vpop.f32.mrb[0].mxu0
    %743 = vdwg.mxu0
    %v744 = vxor.u32 %v741, 2147483648
    %v745 = vmul.f32 %v744, 1.442695
    %v746 = vpow.pop %v745
    %v747 = vadd.f32 %v746, 1.0
    %v748 = vrcp.pop %v747
    %v749 = vmul.f32 1.0, %v748
    %v750 = vtanh.pop %v741
    %v751 = vmul.f32 %v749, %v479
    %753 = vrot.lane.b32.xlu0 %v750, 64
    %v754 = vpop.permute.xlu0 %753
    %v756 = vmul.f32 %v749, %v754
    %758 = vrot.lane.b32.xlu0 %v756, 32
    %v759 = vpop.permute.xlu0 %758
    %v761 = vadd.f32 %v751, %v759
    %v762 = vtanh.pop %v761
    %764 = vrot.lane.b32.xlu0 %v762, 64
    %v765 = vpop.permute.xlu0 %764
    %v767 = vmul.f32 %v749, %v765
    %769 = vrot.lane.b32.xlu0 %v767, 32
    %v770 = vpop.permute.xlu0 %769
    %772 = vrot.lane.b32.xlu0 %v590, 64
    %v773 = vpop.permute.xlu0 %772
    %v775 = vsel %vm95, %v770, %v773
    %v777 = vsel %vm97, %v775, 0
    %779 = vmatprep.subr.mxu0 0.0
    %780 = vmatpush1.msra.mxu0 %v50
    %781 = vmatprep.subr.mxu0 0.0
    %782 = vmatpush1.msra.mxu0 %v51
    %783 = vmatprep.subr.mxu0 0.0
    %784 = vmatpush1.msra.mxu0 %v52
    %785 = vmatprep.subr.mxu0 0.0
    %786 = vmatpush1.msra.mxu0 %v53
    %787 = vmatprep.subr.mxu0 0.0
    %788 = vmatpush1.msra.mxu0 %v54
    %789 = vmatprep.subr.mxu0 0.0
    %790 = vmatpush1.msra.mxu0 %v55
    %791 = vmatprep.subr.mxu0 0.0
    %792 = vmatpush1.msra.mxu0 %v56
    %793 = vmatprep.subr.mxu0 0.0
    %794 = vmatpush1.msra.mxu0 %v57
    %795 = vmatprep.subr.mxu0 0.0
    %796 = vmatpush1.msra.mxu0 0.0
    %797 = vmatprep.subr.mxu0 0.0
    %798 = vmatpush1.msra.mxu0 0.0
    %799 = vmatprep.subr.mxu0 0.0
    %800 = vmatpush1.msra.mxu0 0.0
    %801 = vmatprep.subr.mxu0 0.0
    %802 = vmatpush1.msra.mxu0 0.0
    %803 = vmatprep.subr.mxu0 0.0
    %804 = vmatpush1.msra.mxu0 0.0
    %805 = vmatprep.subr.mxu0 0.0
    %806 = vmatpush1.msra.mxu0 0.0
    %807 = vmatprep.subr.mxu0 0.0
    %808 = vmatpush1.msra.mxu0 0.0
    %809 = vmatprep.subr.mxu0 0.0
    %810 = vmatpush1.msra.mxu0 0.0
    %811 = vmatprep.subr.mxu0 0.0
    %812 = vmatpush1.msra.mxu0 0.0
    %813 = vmatprep.subr.mxu0 0.0
    %814 = vmatpush1.msra.mxu0 0.0
    %815 = vmatprep.subr.mxu0 0.0
    %816 = vmatpush1.msra.mxu0 0.0
    %817 = vmatprep.subr.mxu0 0.0
    %818 = vmatpush1.msra.mxu0 0.0
    %819 = vmatprep.subr.mxu0 0.0
    %820 = vmatpush1.msra.mxu0 0.0
    %821 = vmatprep.subr.mxu0 0.0
    %822 = vmatpush1.msra.mxu0 0.0
    %823 = vmatprep.subr.mxu0 0.0
    %824 = vmatpush1.msra.mxu0 0.0
    %825 = vmatprep.subr.mxu0 0.0
    %826 = vmatpush1.msra.mxu0 0.0
    %827 = vmatprep.subr.mxu0 0.0
    %828 = vmatpush1.msra.mxu0 0.0
    %829 = vmatprep.subr.mxu0 0.0
    %830 = vmatpush1.msra.mxu0 0.0
    %831 = vmatprep.subr.mxu0 0.0
    %832 = vmatpush1.msra.mxu0 0.0
    %833 = vmatprep.subr.mxu0 0.0
    %834 = vmatpush1.msra.mxu0 0.0
    %835 = vmatprep.subr.mxu0 0.0
    %836 = vmatpush1.msra.mxu0 0.0
    %837 = vmatprep.subr.mxu0 0.0
    %838 = vmatpush1.msra.mxu0 0.0
    %839 = vmatprep.subr.mxu0 0.0
    %840 = vmatpush1.msra.mxu0 0.0
    %841 = vmatprep.subr.mxu0 0.0
    %842 = vmatpush1.msra.mxu0 0.0
    %843 = vmatprep.mubr.f32.mxu0 0.0
    %844 = vmatmul.mubr.f32.gmra.mrb[0].mxu0 %v777
    %v845 = vpop.f32.mrb[0].mxu0
    %v846 = vadd.f32 %v71, %v845
    %v847 = vpop.f32.mrb[0].mxu0
    %848 = vdwg.mxu0
    %v849 = vxor.u32 %v846, 2147483648
    %v850 = vmul.f32 %v849, 1.442695
    %v851 = vpow.pop %v850
    %v852 = vadd.f32 %v851, 1.0
    %v853 = vrcp.pop %v852
    %v854 = vmul.f32 1.0, %v853
    %v855 = vtanh.pop %v846
    %v856 = vmul.f32 %v854, %v584
    %858 = vrot.lane.b32.xlu0 %v855, 64
    %v859 = vpop.permute.xlu0 %858
    %v861 = vmul.f32 %v854, %v859
    %863 = vrot.lane.b32.xlu0 %v861, 32
    %v864 = vpop.permute.xlu0 %863
    %v866 = vadd.f32 %v856, %v864
    %v867 = vtanh.pop %v866
    %869 = vrot.lane.b32.xlu0 %v867, 64
    %v870 = vpop.permute.xlu0 %869
    %v872 = vmul.f32 %v854, %v870
    %874 = vrot.lane.b32.xlu0 %v872, 32
    %v875 = vpop.permute.xlu0 %874
    %v876 = vsel %vm95, %v875, 0
    %878 = vmatprep.subr.mxu0 0.0
    %879 = vmatpush1.msra.mxu0 %v73
    %880 = vmatprep.subr.mxu0 0.0
    %881 = vmatpush1.msra.mxu0 %v74
    %882 = vmatprep.subr.mxu0 0.0
    %883 = vmatpush1.msra.mxu0 %v75
    %884 = vmatprep.subr.mxu0 0.0
    %885 = vmatpush1.msra.mxu0 %v76
    %886 = vmatprep.subr.mxu0 0.0
    %887 = vmatpush1.msra.mxu0 0.0
    %888 = vmatprep.subr.mxu0 0.0
    %889 = vmatpush1.msra.mxu0 0.0
    %890 = vmatprep.subr.mxu0 0.0
    %891 = vmatpush1.msra.mxu0 0.0
    %892 = vmatprep.subr.mxu0 0.0
    %893 = vmatpush1.msra.mxu0 0.0
    %894 = vmatprep.subr.mxu0 0.0
    %895 = vmatpush1.msra.mxu0 0.0
    %896 = vmatprep.subr.mxu0 0.0
    %897 = vmatpush1.msra.mxu0 0.0
    %898 = vmatprep.subr.mxu0 0.0
    %899 = vmatpush1.msra.mxu0 0.0
    %900 = vmatprep.subr.mxu0 0.0
    %901 = vmatpush1.msra.mxu0 0.0
    %902 = vmatprep.subr.mxu0 0.0
    %903 = vmatpush1.msra.mxu0 0.0
    %904 = vmatprep.subr.mxu0 0.0
    %905 = vmatpush1.msra.mxu0 0.0
    %906 = vmatprep.subr.mxu0 0.0
    %907 = vmatpush1.msra.mxu0 0.0
    %908 = vmatprep.subr.mxu0 0.0
    %909 = vmatpush1.msra.mxu0 0.0
    %910 = vmatprep.subr.mxu0 0.0
    %911 = vmatpush1.msra.mxu0 0.0
    %912 = vmatprep.subr.mxu0 0.0
    %913 = vmatpush1.msra.mxu0 0.0
    %914 = vmatprep.subr.mxu0 0.0
    %915 = vmatpush1.msra.mxu0 0.0
    %916 = vmatprep.subr.mxu0 0.0
    %917 = vmatpush1.msra.mxu0 0.0
    %918 = vmatprep.subr.mxu0 0.0
    %919 = vmatpush1.msra.mxu0 0.0
    %920 = vmatprep.subr.mxu0 0.0
    %921 = vmatpush1.msra.mxu0 0.0
    %922 = vmatprep.subr.mxu0 0.0
    %923 = vmatpush1.msra.mxu0 0.0
    %924 = vmatprep.subr.mxu0 0.0
    %925 = vmatpush1.msra.mxu0 0.0
    %926 = vmatprep.subr.mxu0 0.0
    %927 = vmatpush1.msra.mxu0 0.0
    %928 = vmatprep.subr.mxu0 0.0
    %929 = vmatpush1.msra.mxu0 0.0
    %930 = vmatprep.subr.mxu0 0.0
    %931 = vmatpush1.msra.mxu0 0.0
    %932 = vmatprep.subr.mxu0 0.0
    %933 = vmatpush1.msra.mxu0 0.0
    %934 = vmatprep.subr.mxu0 0.0
    %935 = vmatpush1.msra.mxu0 0.0
    %936 = vmatprep.subr.mxu0 0.0
    %937 = vmatpush1.msra.mxu0 0.0
    %938 = vmatprep.subr.mxu0 0.0
    %939 = vmatpush1.msra.mxu0 0.0
    %940 = vmatprep.subr.mxu0 0.0
    %941 = vmatpush1.msra.mxu0 0.0
    %942 = vmatprep.mubr.f32.mxu0 0.0
    %943 = vmatmul.mubr.f32.gmra.mrb[0].mxu0 %v876
    %v944 = vpop.f32.mrb[0].mxu0
    %v945 = vadd.f32 %v82, %v944
    %v946 = vpop.f32.mrb[0].mxu0
    %947 = vdwg.mxu0
    %949 = vrot.lane.b32.xlu0 %v767, 64
    %v950 = vpop.permute.xlu0 %949
    %v952 = vsel %vm95, %v875, %v950
    %v954 = vsel %vm97, %v952, 0
    %956 = vmatprep.subr.mxu0 0.0
    %957 = vmatpush1.msra.mxu0 %v41
    %958 = vmatprep.subr.mxu0 0.0
    %959 = vmatpush1.msra.mxu0 %v42
    %960 = vmatprep.subr.mxu0 0.0
    %961 = vmatpush1.msra.mxu0 %v43
    %962 = vmatprep.subr.mxu0 0.0
    %963 = vmatpush1.msra.mxu0 %v44
    %964 = vmatprep.subr.mxu0 0.0
    %965 = vmatpush1.msra.mxu0 %v45
    %966 = vmatprep.subr.mxu0 0.0
    %967 = vmatpush1.msra.mxu0 %v46
    %968 = vmatprep.subr.mxu0 0.0
    %969 = vmatpush1.msra.mxu0 %v47
    %970 = vmatprep.subr.mxu0 0.0
    %971 = vmatpush1.msra.mxu0 %v48
    %972 = vmatprep.subr.mxu0 0.0
    %973 = vmatpush1.msra.mxu0 0.0
    %974 = vmatprep.subr.mxu0 0.0
    %975 = vmatpush1.msra.mxu0 0.0
    %976 = vmatprep.subr.mxu0 0.0
    %977 = vmatpush1.msra.mxu0 0.0
    %978 = vmatprep.subr.mxu0 0.0
    %979 = vmatpush1.msra.mxu0 0.0
    %980 = vmatprep.subr.mxu0 0.0
    %981 = vmatpush1.msra.mxu0 0.0
    %982 = vmatprep.subr.mxu0 0.0
    %983 = vmatpush1.msra.mxu0 0.0
    %984 = vmatprep.subr.mxu0 0.0
    %985 = vmatpush1.msra.mxu0 0.0
    %986 = vmatprep.subr.mxu0 0.0
    %987 = vmatpush1.msra.mxu0 0.0
    %988 = vmatprep.subr.mxu0 0.0
    %989 = vmatpush1.msra.mxu0 0.0
    %990 = vmatprep.subr.mxu0 0.0
    %991 = vmatpush1.msra.mxu0 0.0
    %992 = vmatprep.subr.mxu0 0.0
    %993 = vmatpush1.msra.mxu0 0.0
    %994 = vmatprep.subr.mxu0 0.0
    %995 = vmatpush1.msra.mxu0 0.0
    %996 = vmatprep.subr.mxu0 0.0
    %997 = vmatpush1.msra.mxu0 0.0
    %998 = vmatprep.subr.mxu0 0.0
    %999 = vmatpush1.msra.mxu0 0.0
    %1000 = vmatprep.subr.mxu0 0.0
    %1001 = vmatpush1.msra.mxu0 0.0
    %1002 = vmatprep.subr.mxu0 0.0
    %1003 = vmatpush1.msra.mxu0 0.0
    %1004 = vmatprep.subr.mxu0 0.0
    %1005 = vmatpush1.msra.mxu0 0.0
    %1006 = vmatprep.subr.mxu0 0.0
    %1007 = vmatpush1.msra.mxu0 0.0
    %1008 = vmatprep.subr.mxu0 0.0
    %1009 = vmatpush1.msra.mxu0 0.0
    %1010 = vmatprep.subr.mxu0 0.0
    %1011 = vmatpush1.msra.mxu0 0.0
    %1012 = vmatprep.subr.mxu0 0.0
    %1013 = vmatpush1.msra.mxu0 0.0
    %1014 = vmatprep.subr.mxu0 0.0
    %1015 = vmatpush1.msra.mxu0 0.0
    %1016 = vmatprep.subr.mxu0 0.0
    %1017 = vmatpush1.msra.mxu0 0.0
    %1018 = vmatprep.subr.mxu0 0.0
    %1019 = vmatpush1.msra.mxu0 0.0
    %1020 = vmatprep.mubr.f32.mxu0 0.0
    %1021 = vmatmul.mubr.f32.gmra.mrb[0].mxu0 %v954
    %v1022 = vpop.f32.mrb[0].mxu0
    %v1023 = vadd.f32 %v63, %v1022
    %v1024 = vpop.f32.mrb[0].mxu0
    %1025 = vdwg.mxu0
    %v1026 = vxor.u32 %v1023, 2147483648
    %v1027 = vmul.f32 %v1026, 1.442695
    %v1028 = vpow.pop %v1027
    %v1029 = vadd.f32 %v1028, 1.0
    %v1030 = vrcp.pop %v1029
    %v1031 = vmul.f32 1.0, %v1030
    %v1032 = vtanh.pop %v1023
    %v1033 = vmul.f32 %v1031, %v761
    %1035 = vrot.lane.b32.xlu0 %v1032, 64
    %v1036 = vpop.permute.xlu0 %1035
    %v1038 = vmul.f32 %v1031, %v1036
    %1040 = vrot.lane.b32.xlu0 %v1038, 32
    %v1041 = vpop.permute.xlu0 %1040
    %v1043 = vadd.f32 %v1033, %v1041
    %v1044 = vtanh.pop %v1043
    %1046 = vrot.lane.b32.xlu0 %v1044, 64
    %v1047 = vpop.permute.xlu0 %1046
    %v1049 = vmul.f32 %v1031, %v1047
    %1051 = vrot.lane.b32.xlu0 %v1049, 32
    %v1052 = vpop.permute.xlu0 %1051
    %1054 = vrot.lane.b32.xlu0 %v872, 64
    %v1055 = vpop.permute.xlu0 %1054
    %v1057 = vsel %vm95, %v1052, %v1055
    %v1059 = vsel %vm97, %v1057, 0
    %1061 = vmatprep.subr.mxu0 0.0
    %1062 = vmatpush1.msra.mxu0 %v50
    %1063 = vmatprep.subr.mxu0 0.0
    %1064 = vmatpush1.msra.mxu0 %v51
    %1065 = vmatprep.subr.mxu0 0.0
    %1066 = vmatpush1.msra.mxu0 %v52
    %1067 = vmatprep.subr.mxu0 0.0
    %1068 = vmatpush1.msra.mxu0 %v53
    %1069 = vmatprep.subr.mxu0 0.0
    %1070 = vmatpush1.msra.mxu0 %v54
    %1071 = vmatprep.subr.mxu0 0.0
    %1072 = vmatpush1.msra.mxu0 %v55
    %1073 = vmatprep.subr.mxu0 0.0
    %1074 = vmatpush1.msra.mxu0 %v56
    %1075 = vmatprep.subr.mxu0 0.0
    %1076 = vmatpush1.msra.mxu0 %v57
    %1077 = vmatprep.subr.mxu0 0.0
    %1078 = vmatpush1.msra.mxu0 0.0
    %1079 = vmatprep.subr.mxu0 0.0
    %1080 = vmatpush1.msra.mxu0 0.0
    %1081 = vmatprep.subr.mxu0 0.0
    %1082 = vmatpush1.msra.mxu0 0.0
    %1083 = vmatprep.subr.mxu0 0.0
    %1084 = vmatpush1.msra.mxu0 0.0
    %1085 = vmatprep.subr.mxu0 0.0
    %1086 = vmatpush1.msra.mxu0 0.0
    %1087 = vmatprep.subr.mxu0 0.0
    %1088 = vmatpush1.msra.mxu0 0.0
    %1089 = vmatprep.subr.mxu0 0.0
    %1090 = vmatpush1.msra.mxu0 0.0
    %1091 = vmatprep.subr.mxu0 0.0
    %1092 = vmatpush1.msra.mxu0 0.0
    %1093 = vmatprep.subr.mxu0 0.0
    %1094 = vmatpush1.msra.mxu0 0.0
    %1095 = vmatprep.subr.mxu0 0.0
    %1096 = vmatpush1.msra.mxu0 0.0
    %1097 = vmatprep.subr.mxu0 0.0
    %1098 = vmatpush1.msra.mxu0 0.0
    %1099 = vmatprep.subr.mxu0 0.0
    %1100 = vmatpush1.msra.mxu0 0.0
    %1101 = vmatprep.subr.mxu0 0.0
    %1102 = vmatpush1.msra.mxu0 0.0
    %1103 = vmatprep.subr.mxu0 0.0
    %1104 = vmatpush1.msra.mxu0 0.0
    %1105 = vmatprep.subr.mxu0 0.0
    %1106 = vmatpush1.msra.mxu0 0.0
    %1107 = vmatprep.subr.mxu0 0.0
    %1108 = vmatpush1.msra.mxu0 0.0
    %1109 = vmatprep.subr.mxu0 0.0
    %1110 = vmatpush1.msra.mxu0 0.0
    %1111 = vmatprep.subr.mxu0 0.0
    %1112 = vmatpush1.msra.mxu0 0.0
    %1113 = vmatprep.subr.mxu0 0.0
    %1114 = vmatpush1.msra.mxu0 0.0
    %1115 = vmatprep.subr.mxu0 0.0
    %1116 = vmatpush1.msra.mxu0 0.0
    %1117 = vmatprep.subr.mxu0 0.0
    %1118 = vmatpush1.msra.mxu0 0.0
    %1119 = vmatprep.subr.mxu0 0.0
    %1120 = vmatpush1.msra.mxu0 0.0
    %1121 = vmatprep.subr.mxu0 0.0
    %1122 = vmatpush1.msra.mxu0 0.0
    %1123 = vmatprep.subr.mxu0 0.0
    %1124 = vmatpush1.msra.mxu0 0.0
    %1125 = vmatprep.mubr.f32.mxu0 0.0
    %1126 = vmatmul.mubr.f32.gmra.mrb[0].mxu0 %v1059
    %v1127 = vpop.f32.mrb[0].mxu0
    %v1128 = vadd.f32 %v71, %v1127
    %v1129 = vpop.f32.mrb[0].mxu0
    %1130 = vdwg.mxu0
    %v1131 = vxor.u32 %v1128, 2147483648
    %v1132 = vmul.f32 %v1131, 1.442695
    %v1133 = vpow.pop %v1132
    %v1134 = vadd.f32 %v1133, 1.0
    %v1135 = vrcp.pop %v1134
    %v1136 = vmul.f32 1.0, %v1135
    %v1137 = vtanh.pop %v1128
    %v1138 = vmul.f32 %v1136, %v866
    %1140 = vrot.lane.b32.xlu0 %v1137, 64
    %v1141 = vpop.permute.xlu0 %1140
    %v1143 = vmul.f32 %v1136, %v1141
    %1145 = vrot.lane.b32.xlu0 %v1143, 32
    %v1146 = vpop.permute.xlu0 %1145
    %v1148 = vadd.f32 %v1138, %v1146
    %v1149 = vtanh.pop %v1148
    %1151 = vrot.lane.b32.xlu0 %v1149, 64
    %v1152 = vpop.permute.xlu0 %1151
    %v1154 = vmul.f32 %v1136, %v1152
    %1156 = vrot.lane.b32.xlu0 %v1154, 32
    %v1157 = vpop.permute.xlu0 %1156
    %v1158 = vsel %vm95, %v1157, 0
    %1160 = vmatprep.subr.mxu0 0.0
    %1161 = vmatpush1.msra.mxu0 %v73
    %1162 = vmatprep.subr.mxu0 0.0
    %1163 = vmatpush1.msra.mxu0 %v74
    %1164 = vmatprep.subr.mxu0 0.0
    %1165 = vmatpush1.msra.mxu0 %v75
    %1166 = vmatprep.subr.mxu0 0.0
    %1167 = vmatpush1.msra.mxu0 %v76
    %1168 = vmatprep.subr.mxu0 0.0
    %1169 = vmatpush1.msra.mxu0 0.0
    %1170 = vmatprep.subr.mxu0 0.0
    %1171 = vmatpush1.msra.mxu0 0.0
    %1172 = vmatprep.subr.mxu0 0.0
    %1173 = vmatpush1.msra.mxu0 0.0
    %1174 = vmatprep.subr.mxu0 0.0
    %1175 = vmatpush1.msra.mxu0 0.0
    %1176 = vmatprep.subr.mxu0 0.0
    %1177 = vmatpush1.msra.mxu0 0.0
    %1178 = vmatprep.subr.mxu0 0.0
    %1179 = vmatpush1.msra.mxu0 0.0
    %1180 = vmatprep.subr.mxu0 0.0
    %1181 = vmatpush1.msra.mxu0 0.0
    %1182 = vmatprep.subr.mxu0 0.0
    %1183 = vmatpush1.msra.mxu0 0.0
    %1184 = vmatprep.subr.mxu0 0.0
    %1185 = vmatpush1.msra.mxu0 0.0
    %1186 = vmatprep.subr.mxu0 0.0
    %1187 = vmatpush1.msra.mxu0 0.0
    %1188 = vmatprep.subr.mxu0 0.0
    %1189 = vmatpush1.msra.mxu0 0.0
    %1190 = vmatprep.subr.mxu0 0.0
    %1191 = vmatpush1.msra.mxu0 0.0
    %1192 = vmatprep.subr.mxu0 0.0
    %1193 = vmatpush1.msra.mxu0 0.0
    %1194 = vmatprep.subr.mxu0 0.0
    %1195 = vmatpush1.msra.mxu0 0.0
    %1196 = vmatprep.subr.mxu0 0.0
    %1197 = vmatpush1.msra.mxu0 0.0
    %1198 = vmatprep.subr.mxu0 0.0
    %1199 = vmatpush1.msra.mxu0 0.0
    %1200 = vmatprep.subr.mxu0 0.0
    %1201 = vmatpush1.msra.mxu0 0.0
    %1202 = vmatprep.subr.mxu0 0.0
    %1203 = vmatpush1.msra.mxu0 0.0
    %1204 = vmatprep.subr.mxu0 0.0
    %1205 = vmatpush1.msra.mxu0 0.0
    %1206 = vmatprep.subr.mxu0 0.0
    %1207 = vmatpush1.msra.mxu0 0.0
    %1208 = vmatprep.subr.mxu0 0.0
    %1209 = vmatpush1.msra.mxu0 0.0
    %1210 = vmatprep.subr.mxu0 0.0
    %1211 = vmatpush1.msra.mxu0 0.0
    %1212 = vmatprep.subr.mxu0 0.0
    %1213 = vmatpush1.msra.mxu0 0.0
    %1214 = vmatprep.subr.mxu0 0.0
    %1215 = vmatpush1.msra.mxu0 0.0
    %1216 = vmatprep.subr.mxu0 0.0
    %1217 = vmatpush1.msra.mxu0 0.0
    %1218 = vmatprep.subr.mxu0 0.0
    %1219 = vmatpush1.msra.mxu0 0.0
    %1220 = vmatprep.subr.mxu0 0.0
    %1221 = vmatpush1.msra.mxu0 0.0
    %1222 = vmatprep.subr.mxu0 0.0
    %1223 = vmatpush1.msra.mxu0 0.0
    %1224 = vmatprep.mubr.f32.mxu0 0.0
    %1225 = vmatmul.mubr.f32.gmra.mrb[0].mxu0 %v1158
    %v1226 = vpop.f32.mrb[0].mxu0
    %v1227 = vadd.f32 %v82, %v1226
    %v1228 = vpop.f32.mrb[0].mxu0
    %1229 = vdwg.mxu0
    %1231 = vrot.lane.b32.xlu0 %v1049, 64
    %v1232 = vpop.permute.xlu0 %1231
    %v1234 = vsel %vm95, %v1157, %v1232
    %v1236 = vsel %vm97, %v1234, 0
    %1238 = vmatprep.subr.mxu0 0.0
    %1239 = vmatpush1.msra.mxu0 %v41
    %1240 = vmatprep.subr.mxu0 0.0
    %1241 = vmatpush1.msra.mxu0 %v42
    %1242 = vmatprep.subr.mxu0 0.0
    %1243 = vmatpush1.msra.mxu0 %v43
    %1244 = vmatprep.subr.mxu0 0.0
    %1245 = vmatpush1.msra.mxu0 %v44
    %1246 = vmatprep.subr.mxu0 0.0
    %1247 = vmatpush1.msra.mxu0 %v45
    %1248 = vmatprep.subr.mxu0 0.0
    %1249 = vmatpush1.msra.mxu0 %v46
    %1250 = vmatprep.subr.mxu0 0.0
    %1251 = vmatpush1.msra.mxu0 %v47
    %1252 = vmatprep.subr.mxu0 0.0
    %1253 = vmatpush1.msra.mxu0 %v48
    %1254 = vmatprep.subr.mxu0 0.0
    %1255 = vmatpush1.msra.mxu0 0.0
    %1256 = vmatprep.subr.mxu0 0.0
    %1257 = vmatpush1.msra.mxu0 0.0
    %1258 = vmatprep.subr.mxu0 0.0
    %1259 = vmatpush1.msra.mxu0 0.0
    %1260 = vmatprep.subr.mxu0 0.0
    %1261 = vmatpush1.msra.mxu0 0.0
    %1262 = vmatprep.subr.mxu0 0.0
    %1263 = vmatpush1.msra.mxu0 0.0
    %1264 = vmatprep.subr.mxu0 0.0
    %1265 = vmatpush1.msra.mxu0 0.0
    %1266 = vmatprep.subr.mxu0 0.0
    %1267 = vmatpush1.msra.mxu0 0.0
    %1268 = vmatprep.subr.mxu0 0.0
    %1269 = vmatpush1.msra.mxu0 0.0
    %1270 = vmatprep.subr.mxu0 0.0
    %1271 = vmatpush1.msra.mxu0 0.0
    %1272 = vmatprep.subr.mxu0 0.0
    %1273 = vmatpush1.msra.mxu0 0.0
    %1274 = vmatprep.subr.mxu0 0.0
    %1275 = vmatpush1.msra.mxu0 0.0
    %1276 = vmatprep.subr.mxu0 0.0
    %1277 = vmatpush1.msra.mxu0 0.0
    %1278 = vmatprep.subr.mxu0 0.0
    %1279 = vmatpush1.msra.mxu0 0.0
    %1280 = vmatprep.subr.mxu0 0.0
    %1281 = vmatpush1.msra.mxu0 0.0
    %1282 = vmatprep.subr.mxu0 0.0
    %1283 = vmatpush1.msra.mxu0 0.0
    %1284 = vmatprep.subr.mxu0 0.0
    %1285 = vmatpush1.msra.mxu0 0.0
    %1286 = vmatprep.subr.mxu0 0.0
    %1287 = vmatpush1.msra.mxu0 0.0
    %1288 = vmatprep.subr.mxu0 0.0
    %1289 = vmatpush1.msra.mxu0 0.0
    %1290 = vmatprep.subr.mxu0 0.0
    %1291 = vmatpush1.msra.mxu0 0.0
    %1292 = vmatprep.subr.mxu0 0.0
    %1293 = vmatpush1.msra.mxu0 0.0
    %1294 = vmatprep.subr.mxu0 0.0
    %1295 = vmatpush1.msra.mxu0 0.0
    %1296 = vmatprep.subr.mxu0 0.0
    %1297 = vmatpush1.msra.mxu0 0.0
    %1298 = vmatprep.subr.mxu0 0.0
    %1299 = vmatpush1.msra.mxu0 0.0
    %1300 = vmatprep.subr.mxu0 0.0
    %1301 = vmatpush1.msra.mxu0 0.0
    %1302 = vmatprep.mubr.f32.mxu0 0.0
    %1303 = vmatmul.mubr.f32.gmra.mrb[0].mxu0 %v1236
    %v1304 = vpop.f32.mrb[0].mxu0
    %v1305 = vadd.f32 %v63, %v1304
    %v1306 = vpop.f32.mrb[0].mxu0
    %1307 = vdwg.mxu0
    %v1308 = vxor.u32 %v1305, 2147483648
    %v1309 = vmul.f32 %v1308, 1.442695
    %v1310 = vpow.pop %v1309
    %v1311 = vadd.f32 %v1310, 1.0
    %v1312 = vrcp.pop %v1311
    %v1313 = vmul.f32 1.0, %v1312
    %v1314 = vtanh.pop %v1305
    %v1315 = vmul.f32 %v1313, %v1043
    %1317 = vrot.lane.b32.xlu0 %v1314, 64
    %v1318 = vpop.permute.xlu0 %1317
    %v1320 = vmul.f32 %v1313, %v1318
    %1322 = vrot.lane.b32.xlu0 %v1320, 32
    %v1323 = vpop.permute.xlu0 %1322
    %v1325 = vadd.f32 %v1315, %v1323
    %v1326 = vtanh.pop %v1325
    %1328 = vrot.lane.b32.xlu0 %v1326, 64
    %v1329 = vpop.permute.xlu0 %1328
    %v1331 = vmul.f32 %v1313, %v1329
    %1333 = vrot.lane.b32.xlu0 %v1331, 32
    %v1334 = vpop.permute.xlu0 %1333
    %1336 = vrot.lane.b32.xlu0 %v1154, 64
    %v1337 = vpop.permute.xlu0 %1336
    %v1339 = vsel %vm95, %v1334, %v1337
    %v1341 = vsel %vm97, %v1339, 0
    %1343 = vmatprep.subr.mxu0 0.0
    %1344 = vmatpush1.msra.mxu0 %v50
    %1345 = vmatprep.subr.mxu0 0.0
    %1346 = vmatpush1.msra.mxu0 %v51
    %1347 = vmatprep.subr.mxu0 0.0
    %1348 = vmatpush1.msra.mxu0 %v52
    %1349 = vmatprep.subr.mxu0 0.0
    %1350 = vmatpush1.msra.mxu0 %v53
    %1351 = vmatprep.subr.mxu0 0.0
    %1352 = vmatpush1.msra.mxu0 %v54
    %1353 = vmatprep.subr.mxu0 0.0
    %1354 = vmatpush1.msra.mxu0 %v55
    %1355 = vmatprep.subr.mxu0 0.0
    %1356 = vmatpush1.msra.mxu0 %v56
    %1357 = vmatprep.subr.mxu0 0.0
    %1358 = vmatpush1.msra.mxu0 %v57
    %1359 = vmatprep.subr.mxu0 0.0
    %1360 = vmatpush1.msra.mxu0 0.0
    %1361 = vmatprep.subr.mxu0 0.0
    %1362 = vmatpush1.msra.mxu0 0.0
    %1363 = vmatprep.subr.mxu0 0.0
    %1364 = vmatpush1.msra.mxu0 0.0
    %1365 = vmatprep.subr.mxu0 0.0
    %1366 = vmatpush1.msra.mxu0 0.0
    %1367 = vmatprep.subr.mxu0 0.0
    %1368 = vmatpush1.msra.mxu0 0.0
    %1369 = vmatprep.subr.mxu0 0.0
    %1370 = vmatpush1.msra.mxu0 0.0
    %1371 = vmatprep.subr.mxu0 0.0
    %1372 = vmatpush1.msra.mxu0 0.0
    %1373 = vmatprep.subr.mxu0 0.0
    %1374 = vmatpush1.msra.mxu0 0.0
    %1375 = vmatprep.subr.mxu0 0.0
    %1376 = vmatpush1.msra.mxu0 0.0
    %1377 = vmatprep.subr.mxu0 0.0
    %1378 = vmatpush1.msra.mxu0 0.0
    %1379 = vmatprep.subr.mxu0 0.0
    %1380 = vmatpush1.msra.mxu0 0.0
    %1381 = vmatprep.subr.mxu0 0.0
    %1382 = vmatpush1.msra.mxu0 0.0
    %1383 = vmatprep.subr.mxu0 0.0
    %1384 = vmatpush1.msra.mxu0 0.0
    %1385 = vmatprep.subr.mxu0 0.0
    %1386 = vmatpush1.msra.mxu0 0.0
    %1387 = vmatprep.subr.mxu0 0.0
    %1388 = vmatpush1.msra.mxu0 0.0
    %1389 = vmatprep.subr.mxu0 0.0
    %1390 = vmatpush1.msra.mxu0 0.0
    %1391 = vmatprep.subr.mxu0 0.0
    %1392 = vmatpush1.msra.mxu0 0.0
    %1393 = vmatprep.subr.mxu0 0.0
    %1394 = vmatpush1.msra.mxu0 0.0
    %1395 = vmatprep.subr.mxu0 0.0
    %1396 = vmatpush1.msra.mxu0 0.0
    %1397 = vmatprep.subr.mxu0 0.0
    %1398 = vmatpush1.msra.mxu0 0.0
    %1399 = vmatprep.subr.mxu0 0.0
    %1400 = vmatpush1.msra.mxu0 0.0
    %1401 = vmatprep.subr.mxu0 0.0
    %1402 = vmatpush1.msra.mxu0 0.0
    %1403 = vmatprep.subr.mxu0 0.0
    %1404 = vmatpush1.msra.mxu0 0.0
    %1405 = vmatprep.subr.mxu0 0.0
    %1406 = vmatpush1.msra.mxu0 0.0
    %1407 = vmatprep.mubr.f32.mxu0 0.0
    %1408 = vmatmul.mubr.f32.gmra.mrb[0].mxu0 %v1341
    %v1409 = vpop.f32.mrb[0].mxu0
    %v1410 = vadd.f32 %v71, %v1409
    %v1411 = vpop.f32.mrb[0].mxu0
    %1412 = vdwg.mxu0
    %v1413 = vxor.u32 %v1410, 2147483648
    %v1414 = vmul.f32 %v1413, 1.442695
    %v1415 = vpow.pop %v1414
    %v1416 = vadd.f32 %v1415, 1.0
    %v1417 = vrcp.pop %v1416
    %v1418 = vmul.f32 1.0, %v1417
    %v1419 = vtanh.pop %v1410
    %v1420 = vmul.f32 %v1418, %v1148
    %1422 = vrot.lane.b32.xlu0 %v1419, 64
    %v1423 = vpop.permute.xlu0 %1422
    %v1425 = vmul.f32 %v1418, %v1423
    %1427 = vrot.lane.b32.xlu0 %v1425, 32
    %v1428 = vpop.permute.xlu0 %1427
    %v1430 = vadd.f32 %v1420, %v1428
    %v1431 = vtanh.pop %v1430
    %1433 = vrot.lane.b32.xlu0 %v1431, 64
    %v1434 = vpop.permute.xlu0 %1433
    %v1436 = vmul.f32 %v1418, %v1434
    %1438 = vrot.lane.b32.xlu0 %v1436, 32
    %v1439 = vpop.permute.xlu0 %1438
    %v1440 = vsel %vm95, %v1439, 0
    %1442 = vmatprep.subr.mxu0 0.0
    %1443 = vmatpush1.msra.mxu0 %v73
    %1444 = vmatprep.subr.mxu0 0.0
    %1445 = vmatpush1.msra.mxu0 %v74
    %1446 = vmatprep.subr.mxu0 0.0
    %1447 = vmatpush1.msra.mxu0 %v75
    %1448 = vmatprep.subr.mxu0 0.0
    %1449 = vmatpush1.msra.mxu0 %v76
    %1450 = vmatprep.subr.mxu0 0.0
    %1451 = vmatpush1.msra.mxu0 0.0
    %1452 = vmatprep.subr.mxu0 0.0
    %1453 = vmatpush1.msra.mxu0 0.0
    %1454 = vmatprep.subr.mxu0 0.0
    %1455 = vmatpush1.msra.mxu0 0.0
    %1456 = vmatprep.subr.mxu0 0.0
    %1457 = vmatpush1.msra.mxu0 0.0
    %1458 = vmatprep.subr.mxu0 0.0
    %1459 = vmatpush1.msra.mxu0 0.0
    %1460 = vmatprep.subr.mxu0 0.0
    %1461 = vmatpush1.msra.mxu0 0.0
    %1462 = vmatprep.subr.mxu0 0.0
    %1463 = vmatpush1.msra.mxu0 0.0
    %1464 = vmatprep.subr.mxu0 0.0
    %1465 = vmatpush1.msra.mxu0 0.0
    %1466 = vmatprep.subr.mxu0 0.0
    %1467 = vmatpush1.msra.mxu0 0.0
    %1468 = vmatprep.subr.mxu0 0.0
    %1469 = vmatpush1.msra.mxu0 0.0
    %1470 = vmatprep.subr.mxu0 0.0
    %1471 = vmatpush1.msra.mxu0 0.0
    %1472 = vmatprep.subr.mxu0 0.0
    %1473 = vmatpush1.msra.mxu0 0.0
    %1474 = vmatprep.subr.mxu0 0.0
    %1475 = vmatpush1.msra.mxu0 0.0
    %1476 = vmatprep.subr.mxu0 0.0
    %1477 = vmatpush1.msra.mxu0 0.0
    %1478 = vmatprep.subr.mxu0 0.0
    %1479 = vmatpush1.msra.mxu0 0.0
    %1480 = vmatprep.subr.mxu0 0.0
    %1481 = vmatpush1.msra.mxu0 0.0
    %1482 = vmatprep.subr.mxu0 0.0
    %1483 = vmatpush1.msra.mxu0 0.0
    %1484 = vmatprep.subr.mxu0 0.0
    %1485 = vmatpush1.msra.mxu0 0.0
    %1486 = vmatprep.subr.mxu0 0.0
    %1487 = vmatpush1.msra.mxu0 0.0
    %1488 = vmatprep.subr.mxu0 0.0
    %1489 = vmatpush1.msra.mxu0 0.0
    %1490 = vmatprep.subr.mxu0 0.0
    %1491 = vmatpush1.msra.mxu0 0.0
    %1492 = vmatprep.subr.mxu0 0.0
    %1493 = vmatpush1.msra.mxu0 0.0
    %1494 = vmatprep.subr.mxu0 0.0
    %1495 = vmatpush1.msra.mxu0 0.0
    %1496 = vmatprep.subr.mxu0 0.0
    %1497 = vmatpush1.msra.mxu0 0.0
    %1498 = vmatprep.subr.mxu0 0.0
    %1499 = vmatpush1.msra.mxu0 0.0
    %1500 = vmatprep.subr.mxu0 0.0
    %1501 = vmatpush1.msra.mxu0 0.0
    %1502 = vmatprep.subr.mxu0 0.0
    %1503 = vmatpush1.msra.mxu0 0.0
    %1504 = vmatprep.subr.mxu0 0.0
    %1505 = vmatpush1.msra.mxu0 0.0
    %1506 = vmatprep.mubr.f32.mxu0 0.0
    %1507 = vmatmul.mubr.f32.gmra.mrb[0].mxu0 %v1440
    %v1508 = vpop.f32.mrb[0].mxu0
    %v1509 = vadd.f32 %v82, %v1508
    %v1510 = vpop.f32.mrb[0].mxu0
    %1511 = vdwg.mxu0
    %1513 = vrot.lane.b32.xlu0 %v1331, 64
    %v1514 = vpop.permute.xlu0 %1513
    %v1516 = vsel %vm95, %v1439, %v1514
    %v1518 = vsel %vm97, %v1516, 0
    %1520 = vmatprep.subr.mxu0 0.0
    %1521 = vmatpush1.msra.mxu0 %v41
    %1522 = vmatprep.subr.mxu0 0.0
    %1523 = vmatpush1.msra.mxu0 %v42
    %1524 = vmatprep.subr.mxu0 0.0
    %1525 = vmatpush1.msra.mxu0 %v43
    %1526 = vmatprep.subr.mxu0 0.0
    %1527 = vmatpush1.msra.mxu0 %v44
    %1528 = vmatprep.subr.mxu0 0.0
    %1529 = vmatpush1.msra.mxu0 %v45
    %1530 = vmatprep.subr.mxu0 0.0
    %1531 = vmatpush1.msra.mxu0 %v46
    %1532 = vmatprep.subr.mxu0 0.0
    %1533 = vmatpush1.msra.mxu0 %v47
    %1534 = vmatprep.subr.mxu0 0.0
    %1535 = vmatpush1.msra.mxu0 %v48
    %1536 = vmatprep.subr.mxu0 0.0
    %1537 = vmatpush1.msra.mxu0 0.0
    %1538 = vmatprep.subr.mxu0 0.0
    %1539 = vmatpush1.msra.mxu0 0.0
    %1540 = vmatprep.subr.mxu0 0.0
    %1541 = vmatpush1.msra.mxu0 0.0
    %1542 = vmatprep.subr.mxu0 0.0
    %1543 = vmatpush1.msra.mxu0 0.0
    %1544 = vmatprep.subr.mxu0 0.0
    %1545 = vmatpush1.msra.mxu0 0.0
    %1546 = vmatprep.subr.mxu0 0.0
    %1547 = vmatpush1.msra.mxu0 0.0
    %1548 = vmatprep.subr.mxu0 0.0
    %1549 = vmatpush1.msra.mxu0 0.0
    %1550 = vmatprep.subr.mxu0 0.0
    %1551 = vmatpush1.msra.mxu0 0.0
    %1552 = vmatprep.subr.mxu0 0.0
    %1553 = vmatpush1.msra.mxu0 0.0
    %1554 = vmatprep.subr.mxu0 0.0
    %1555 = vmatpush1.msra.mxu0 0.0
    %1556 = vmatprep.subr.mxu0 0.0
    %1557 = vmatpush1.msra.mxu0 0.0
    %1558 = vmatprep.subr.mxu0 0.0
    %1559 = vmatpush1.msra.mxu0 0.0
    %1560 = vmatprep.subr.mxu0 0.0
    %1561 = vmatpush1.msra.mxu0 0.0
    %1562 = vmatprep.subr.mxu0 0.0
    %1563 = vmatpush1.msra.mxu0 0.0
    %1564 = vmatprep.subr.mxu0 0.0
    %1565 = vmatpush1.msra.mxu0 0.0
    %1566 = vmatprep.subr.mxu0 0.0
    %1567 = vmatpush1.msra.mxu0 0.0
    %1568 = vmatprep.subr.mxu0 0.0
    %1569 = vmatpush1.msra.mxu0 0.0
    %1570 = vmatprep.subr.mxu0 0.0
    %1571 = vmatpush1.msra.mxu0 0.0
    %1572 = vmatprep.subr.mxu0 0.0
    %1573 = vmatpush1.msra.mxu0 0.0
    %1574 = vmatprep.subr.mxu0 0.0
    %1575 = vmatpush1.msra.mxu0 0.0
    %1576 = vmatprep.subr.mxu0 0.0
    %1577 = vmatpush1.msra.mxu0 0.0
    %1578 = vmatprep.subr.mxu0 0.0
    %1579 = vmatpush1.msra.mxu0 0.0
    %1580 = vmatprep.subr.mxu0 0.0
    %1581 = vmatpush1.msra.mxu0 0.0
    %1582 = vmatprep.subr.mxu0 0.0
    %1583 = vmatpush1.msra.mxu0 0.0
    %1584 = vmatprep.mubr.f32.mxu0 0.0
    %1585 = vmatmul.mubr.f32.gmra.mrb[0].mxu0 %v1518
    %v1586 = vpop.f32.mrb[0].mxu0
    %v1587 = vadd.f32 %v63, %v1586
    %v1588 = vpop.f32.mrb[0].mxu0
    %1589 = vdwg.mxu0
    %v1590 = vxor.u32 %v1587, 2147483648
    %v1591 = vmul.f32 %v1590, 1.442695
    %v1592 = vpow.pop %v1591
    %v1593 = vadd.f32 %v1592, 1.0
    %v1594 = vrcp.pop %v1593
    %v1595 = vmul.f32 1.0, %v1594
    %v1596 = vtanh.pop %v1587
    %v1597 = vmul.f32 %v1595, %v1325
    %1599 = vrot.lane.b32.xlu0 %v1596, 64
    %v1600 = vpop.permute.xlu0 %1599
    %v1602 = vmul.f32 %v1595, %v1600
    %1604 = vrot.lane.b32.xlu0 %v1602, 32
    %v1605 = vpop.permute.xlu0 %1604
    %v1607 = vadd.f32 %v1597, %v1605
    %v1608 = vtanh.pop %v1607
    %1610 = vrot.lane.b32.xlu0 %v1608, 64
    %v1611 = vpop.permute.xlu0 %1610
    %v1613 = vmul.f32 %v1595, %v1611
    %1615 = vrot.lane.b32.xlu0 %v1613, 32
    %v1616 = vpop.permute.xlu0 %1615
    %1618 = vrot.lane.b32.xlu0 %v1436, 64
    %v1619 = vpop.permute.xlu0 %1618
    %v1621 = vsel %vm95, %v1616, %v1619
    %v1623 = vsel %vm97, %v1621, 0
    %1625 = vmatprep.subr.mxu0 0.0
    %1626 = vmatpush1.msra.mxu0 %v50
    %1627 = vmatprep.subr.mxu0 0.0
    %1628 = vmatpush1.msra.mxu0 %v51
    %1629 = vmatprep.subr.mxu0 0.0
    %1630 = vmatpush1.msra.mxu0 %v52
    %1631 = vmatprep.subr.mxu0 0.0
    %1632 = vmatpush1.msra.mxu0 %v53
    %1633 = vmatprep.subr.mxu0 0.0
    %1634 = vmatpush1.msra.mxu0 %v54
    %1635 = vmatprep.subr.mxu0 0.0
    %1636 = vmatpush1.msra.mxu0 %v55
    %1637 = vmatprep.subr.mxu0 0.0
    %1638 = vmatpush1.msra.mxu0 %v56
    %1639 = vmatprep.subr.mxu0 0.0
    %1640 = vmatpush1.msra.mxu0 %v57
    %1641 = vmatprep.subr.mxu0 0.0
    %1642 = vmatpush1.msra.mxu0 0.0
    %1643 = vmatprep.subr.mxu0 0.0
    %1644 = vmatpush1.msra.mxu0 0.0
    %1645 = vmatprep.subr.mxu0 0.0
    %1646 = vmatpush1.msra.mxu0 0.0
    %1647 = vmatprep.subr.mxu0 0.0
    %1648 = vmatpush1.msra.mxu0 0.0
    %1649 = vmatprep.subr.mxu0 0.0
    %1650 = vmatpush1.msra.mxu0 0.0
    %1651 = vmatprep.subr.mxu0 0.0
    %1652 = vmatpush1.msra.mxu0 0.0
    %1653 = vmatprep.subr.mxu0 0.0
    %1654 = vmatpush1.msra.mxu0 0.0
    %1655 = vmatprep.subr.mxu0 0.0
    %1656 = vmatpush1.msra.mxu0 0.0
    %1657 = vmatprep.subr.mxu0 0.0
    %1658 = vmatpush1.msra.mxu0 0.0
    %1659 = vmatprep.subr.mxu0 0.0
    %1660 = vmatpush1.msra.mxu0 0.0
    %1661 = vmatprep.subr.mxu0 0.0
    %1662 = vmatpush1.msra.mxu0 0.0
    %1663 = vmatprep.subr.mxu0 0.0
    %1664 = vmatpush1.msra.mxu0 0.0
    %1665 = vmatprep.subr.mxu0 0.0
    %1666 = vmatpush1.msra.mxu0 0.0
    %1667 = vmatprep.subr.mxu0 0.0
    %1668 = vmatpush1.msra.mxu0 0.0
    %1669 = vmatprep.subr.mxu0 0.0
    %1670 = vmatpush1.msra.mxu0 0.0
    %1671 = vmatprep.subr.mxu0 0.0
    %1672 = vmatpush1.msra.mxu0 0.0
    %1673 = vmatprep.subr.mxu0 0.0
    %1674 = vmatpush1.msra.mxu0 0.0
    %1675 = vmatprep.subr.mxu0 0.0
    %1676 = vmatpush1.msra.mxu0 0.0
    %1677 = vmatprep.subr.mxu0 0.0
    %1678 = vmatpush1.msra.mxu0 0.0
    %1679 = vmatprep.subr.mxu0 0.0
    %1680 = vmatpush1.msra.mxu0 0.0
    %1681 = vmatprep.subr.mxu0 0.0
    %1682 = vmatpush1.msra.mxu0 0.0
    %1683 = vmatprep.subr.mxu0 0.0
    %1684 = vmatpush1.msra.mxu0 0.0
    %1685 = vmatprep.subr.mxu0 0.0
    %1686 = vmatpush1.msra.mxu0 0.0
    %1687 = vmatprep.subr.mxu0 0.0
    %1688 = vmatpush1.msra.mxu0 0.0
    %1689 = vmatprep.mubr.f32.mxu0 0.0
    %1690 = vmatmul.mubr.f32.gmra.mrb[0].mxu0 %v1623
    %v1691 = vpop.f32.mrb[0].mxu0
    %v1692 = vadd.f32 %v71, %v1691
    %v1693 = vpop.f32.mrb[0].mxu0
    %1694 = vdwg.mxu0
    %v1695 = vxor.u32 %v1692, 2147483648
    %v1696 = vmul.f32 %v1695, 1.442695
    %v1697 = vpow.pop %v1696
    %v1698 = vadd.f32 %v1697, 1.0
    %v1699 = vrcp.pop %v1698
    %v1700 = vmul.f32 1.0, %v1699
    %v1701 = vtanh.pop %v1692
    %v1702 = vmul.f32 %v1700, %v1430
    %1704 = vrot.lane.b32.xlu0 %v1701, 64
    %v1705 = vpop.permute.xlu0 %1704
    %v1707 = vmul.f32 %v1700, %v1705
    %1709 = vrot.lane.b32.xlu0 %v1707, 32
    %v1710 = vpop.permute.xlu0 %1709
    %v1712 = vadd.f32 %v1702, %v1710
    %v1713 = vtanh.pop %v1712
    %1715 = vrot.lane.b32.xlu0 %v1713, 64
    %v1716 = vpop.permute.xlu0 %1715
    %v1718 = vmul.f32 %v1700, %v1716
    %1720 = vrot.lane.b32.xlu0 %v1718, 32
    %v1721 = vpop.permute.xlu0 %1720
    %v1722 = vsel %vm95, %v1721, 0
    %1724 = vmatprep.subr.mxu0 0.0
    %1725 = vmatpush1.msra.mxu0 %v73
    %1726 = vmatprep.subr.mxu0 0.0
    %1727 = vmatpush1.msra.mxu0 %v74
    %1728 = vmatprep.subr.mxu0 0.0
    %1729 = vmatpush1.msra.mxu0 %v75
    %1730 = vmatprep.subr.mxu0 0.0
    %1731 = vmatpush1.msra.mxu0 %v76
    %1732 = vmatprep.subr.mxu0 0.0
    %1733 = vmatpush1.msra.mxu0 0.0
    %1734 = vmatprep.subr.mxu0 0.0
    %1735 = vmatpush1.msra.mxu0 0.0
    %1736 = vmatprep.subr.mxu0 0.0
    %1737 = vmatpush1.msra.mxu0 0.0
    %1738 = vmatprep.subr.mxu0 0.0
    %1739 = vmatpush1.msra.mxu0 0.0
    %1740 = vmatprep.subr.mxu0 0.0
    %1741 = vmatpush1.msra.mxu0 0.0
    %1742 = vmatprep.subr.mxu0 0.0
    %1743 = vmatpush1.msra.mxu0 0.0
    %1744 = vmatprep.subr.mxu0 0.0
    %1745 = vmatpush1.msra.mxu0 0.0
    %1746 = vmatprep.subr.mxu0 0.0
    %1747 = vmatpush1.msra.mxu0 0.0
    %1748 = vmatprep.subr.mxu0 0.0
    %1749 = vmatpush1.msra.mxu0 0.0
    %1750 = vmatprep.subr.mxu0 0.0
    %1751 = vmatpush1.msra.mxu0 0.0
    %1752 = vmatprep.subr.mxu0 0.0
    %1753 = vmatpush1.msra.mxu0 0.0
    %1754 = vmatprep.subr.mxu0 0.0
    %1755 = vmatpush1.msra.mxu0 0.0
    %1756 = vmatprep.subr.mxu0 0.0
    %1757 = vmatpush1.msra.mxu0 0.0
    %1758 = vmatprep.subr.mxu0 0.0
    %1759 = vmatpush1.msra.mxu0 0.0
    %1760 = vmatprep.subr.mxu0 0.0
    %1761 = vmatpush1.msra.mxu0 0.0
    %1762 = vmatprep.subr.mxu0 0.0
    %1763 = vmatpush1.msra.mxu0 0.0
    %1764 = vmatprep.subr.mxu0 0.0
    %1765 = vmatpush1.msra.mxu0 0.0
    %1766 = vmatprep.subr.mxu0 0.0
    %1767 = vmatpush1.msra.mxu0 0.0
    %1768 = vmatprep.subr.mxu0 0.0
    %1769 = vmatpush1.msra.mxu0 0.0
    %1770 = vmatprep.subr.mxu0 0.0
    %1771 = vmatpush1.msra.mxu0 0.0
    %1772 = vmatprep.subr.mxu0 0.0
    %1773 = vmatpush1.msra.mxu0 0.0
    %1774 = vmatprep.subr.mxu0 0.0
    %1775 = vmatpush1.msra.mxu0 0.0
    %1776 = vmatprep.subr.mxu0 0.0
    %1777 = vmatpush1.msra.mxu0 0.0
    %1778 = vmatprep.subr.mxu0 0.0
    %1779 = vmatpush1.msra.mxu0 0.0
    %1780 = vmatprep.subr.mxu0 0.0
    %1781 = vmatpush1.msra.mxu0 0.0
    %1782 = vmatprep.subr.mxu0 0.0
    %1783 = vmatpush1.msra.mxu0 0.0
    %1784 = vmatprep.subr.mxu0 0.0
    %1785 = vmatpush1.msra.mxu0 0.0
    %1786 = vmatprep.subr.mxu0 0.0
    %1787 = vmatpush1.msra.mxu0 0.0
    %1788 = vmatprep.mubr.f32.mxu0 0.0
    %1789 = vmatmul.mubr.f32.gmra.mrb[0].mxu0 %v1722
    %v1790 = vpop.f32.mrb[0].mxu0
    %v1791 = vadd.f32 %v82, %v1790
    %v1792 = vpop.f32.mrb[0].mxu0
    %1793 = vdwg.mxu0
    %1795 = vrot.lane.b32.xlu0 %v1613, 64
    %v1796 = vpop.permute.xlu0 %1795
    %v1798 = vsel %vm95, %v1721, %v1796
    %v1800 = vsel %vm97, %v1798, 0
    %1802 = vmatprep.subr.mxu0 0.0
    %1803 = vmatpush1.msra.mxu0 %v41
    %1804 = vmatprep.subr.mxu0 0.0
    %1805 = vmatpush1.msra.mxu0 %v42
    %1806 = vmatprep.subr.mxu0 0.0
    %1807 = vmatpush1.msra.mxu0 %v43
    %1808 = vmatprep.subr.mxu0 0.0
    %1809 = vmatpush1.msra.mxu0 %v44
    %1810 = vmatprep.subr.mxu0 0.0
    %1811 = vmatpush1.msra.mxu0 %v45
    %1812 = vmatprep.subr.mxu0 0.0
    %1813 = vmatpush1.msra.mxu0 %v46
    %1814 = vmatprep.subr.mxu0 0.0
    %1815 = vmatpush1.msra.mxu0 %v47
    %1816 = vmatprep.subr.mxu0 0.0
    %1817 = vmatpush1.msra.mxu0 %v48
    %1818 = vmatprep.subr.mxu0 0.0
    %1819 = vmatpush1.msra.mxu0 0.0
    %1820 = vmatprep.subr.mxu0 0.0
    %1821 = vmatpush1.msra.mxu0 0.0
    %1822 = vmatprep.subr.mxu0 0.0
    %1823 = vmatpush1.msra.mxu0 0.0
    %1824 = vmatprep.subr.mxu0 0.0
    %1825 = vmatpush1.msra.mxu0 0.0
    %1826 = vmatprep.subr.mxu0 0.0
    %1827 = vmatpush1.msra.mxu0 0.0
    %1828 = vmatprep.subr.mxu0 0.0
    %1829 = vmatpush1.msra.mxu0 0.0
    %1830 = vmatprep.subr.mxu0 0.0
    %1831 = vmatpush1.msra.mxu0 0.0
    %1832 = vmatprep.subr.mxu0 0.0
    %1833 = vmatpush1.msra.mxu0 0.0
    %1834 = vmatprep.subr.mxu0 0.0
    %1835 = vmatpush1.msra.mxu0 0.0
    %1836 = vmatprep.subr.mxu0 0.0
    %1837 = vmatpush1.msra.mxu0 0.0
    %1838 = vmatprep.subr.mxu0 0.0
    %1839 = vmatpush1.msra.mxu0 0.0
    %1840 = vmatprep.subr.mxu0 0.0
    %1841 = vmatpush1.msra.mxu0 0.0
    %1842 = vmatprep.subr.mxu0 0.0
    %1843 = vmatpush1.msra.mxu0 0.0
    %1844 = vmatprep.subr.mxu0 0.0
    %1845 = vmatpush1.msra.mxu0 0.0
    %1846 = vmatprep.subr.mxu0 0.0
    %1847 = vmatpush1.msra.mxu0 0.0
    %1848 = vmatprep.subr.mxu0 0.0
    %1849 = vmatpush1.msra.mxu0 0.0
    %1850 = vmatprep.subr.mxu0 0.0
    %1851 = vmatpush1.msra.mxu0 0.0
    %1852 = vmatprep.subr.mxu0 0.0
    %1853 = vmatpush1.msra.mxu0 0.0
    %1854 = vmatprep.subr.mxu0 0.0
    %1855 = vmatpush1.msra.mxu0 0.0
    %1856 = vmatprep.subr.mxu0 0.0
    %1857 = vmatpush1.msra.mxu0 0.0
    %1858 = vmatprep.subr.mxu0 0.0
    %1859 = vmatpush1.msra.mxu0 0.0
    %1860 = vmatprep.subr.mxu0 0.0
    %1861 = vmatpush1.msra.mxu0 0.0
    %1862 = vmatprep.subr.mxu0 0.0
    %1863 = vmatpush1.msra.mxu0 0.0
    %1864 = vmatprep.subr.mxu0 0.0
    %1865 = vmatpush1.msra.mxu0 0.0
    %1866 = vmatprep.mubr.f32.mxu0 0.0
    %1867 = vmatmul.mubr.f32.gmra.mrb[0].mxu0 %v1800
    %v1868 = vpop.f32.mrb[0].mxu0
    %v1869 = vadd.f32 %v63, %v1868
    %v1870 = vpop.f32.mrb[0].mxu0
    %1871 = vdwg.mxu0
    %v1872 = vxor.u32 %v1869, 2147483648
    %v1873 = vmul.f32 %v1872, 1.442695
    %v1874 = vpow.pop %v1873
    %v1875 = vadd.f32 %v1874, 1.0
    %v1876 = vrcp.pop %v1875
    %v1877 = vmul.f32 1.0, %v1876
    %v1878 = vtanh.pop %v1869
    %v1879 = vmul.f32 %v1877, %v1607
    %1881 = vrot.lane.b32.xlu0 %v1878, 64
    %v1882 = vpop.permute.xlu0 %1881
    %v1884 = vmul.f32 %v1877, %v1882
    %1886 = vrot.lane.b32.xlu0 %v1884, 32
    %v1887 = vpop.permute.xlu0 %1886
    %v1889 = vadd.f32 %v1879, %v1887
    %v1890 = vtanh.pop %v1889
    %1892 = vrot.lane.b32.xlu0 %v1890, 64
    %v1893 = vpop.permute.xlu0 %1892
    %v1895 = vmul.f32 %v1877, %v1893
    %1897 = vrot.lane.b32.xlu0 %v1895, 32
    %v1898 = vpop.permute.xlu0 %1897
    %1900 = vrot.lane.b32.xlu0 %v1718, 64
    %v1901 = vpop.permute.xlu0 %1900
    %v1903 = vsel %vm95, %v1898, %v1901
    %v1905 = vsel %vm97, %v1903, 0
    %1907 = vmatprep.subr.mxu0 0.0
    %1908 = vmatpush1.msra.mxu0 %v50
    %1909 = vmatprep.subr.mxu0 0.0
    %1910 = vmatpush1.msra.mxu0 %v51
    %1911 = vmatprep.subr.mxu0 0.0
    %1912 = vmatpush1.msra.mxu0 %v52
    %1913 = vmatprep.subr.mxu0 0.0
    %1914 = vmatpush1.msra.mxu0 %v53
    %1915 = vmatprep.subr.mxu0 0.0
    %1916 = vmatpush1.msra.mxu0 %v54
    %1917 = vmatprep.subr.mxu0 0.0
    %1918 = vmatpush1.msra.mxu0 %v55
    %1919 = vmatprep.subr.mxu0 0.0
    %1920 = vmatpush1.msra.mxu0 %v56
    %1921 = vmatprep.subr.mxu0 0.0
    %1922 = vmatpush1.msra.mxu0 %v57
    %1923 = vmatprep.subr.mxu0 0.0
    %1924 = vmatpush1.msra.mxu0 0.0
    %1925 = vmatprep.subr.mxu0 0.0
    %1926 = vmatpush1.msra.mxu0 0.0
    %1927 = vmatprep.subr.mxu0 0.0
    %1928 = vmatpush1.msra.mxu0 0.0
    %1929 = vmatprep.subr.mxu0 0.0
    %1930 = vmatpush1.msra.mxu0 0.0
    %1931 = vmatprep.subr.mxu0 0.0
    %1932 = vmatpush1.msra.mxu0 0.0
    %1933 = vmatprep.subr.mxu0 0.0
    %1934 = vmatpush1.msra.mxu0 0.0
    %1935 = vmatprep.subr.mxu0 0.0
    %1936 = vmatpush1.msra.mxu0 0.0
    %1937 = vmatprep.subr.mxu0 0.0
    %1938 = vmatpush1.msra.mxu0 0.0
    %1939 = vmatprep.subr.mxu0 0.0
    %1940 = vmatpush1.msra.mxu0 0.0
    %1941 = vmatprep.subr.mxu0 0.0
    %1942 = vmatpush1.msra.mxu0 0.0
    %1943 = vmatprep.subr.mxu0 0.0
    %1944 = vmatpush1.msra.mxu0 0.0
    %1945 = vmatprep.subr.mxu0 0.0
    %1946 = vmatpush1.msra.mxu0 0.0
    %1947 = vmatprep.subr.mxu0 0.0
    %1948 = vmatpush1.msra.mxu0 0.0
    %1949 = vmatprep.subr.mxu0 0.0
    %1950 = vmatpush1.msra.mxu0 0.0
    %1951 = vmatprep.subr.mxu0 0.0
    %1952 = vmatpush1.msra.mxu0 0.0
    %1953 = vmatprep.subr.mxu0 0.0
    %1954 = vmatpush1.msra.mxu0 0.0
    %1955 = vmatprep.subr.mxu0 0.0
    %1956 = vmatpush1.msra.mxu0 0.0
    %1957 = vmatprep.subr.mxu0 0.0
    %1958 = vmatpush1.msra.mxu0 0.0
    %1959 = vmatprep.subr.mxu0 0.0
    %1960 = vmatpush1.msra.mxu0 0.0
    %1961 = vmatprep.subr.mxu0 0.0
    %1962 = vmatpush1.msra.mxu0 0.0
    %1963 = vmatprep.subr.mxu0 0.0
    %1964 = vmatpush1.msra.mxu0 0.0
    %1965 = vmatprep.subr.mxu0 0.0
    %1966 = vmatpush1.msra.mxu0 0.0
    %1967 = vmatprep.subr.mxu0 0.0
    %1968 = vmatpush1.msra.mxu0 0.0
    %1969 = vmatprep.subr.mxu0 0.0
    %1970 = vmatpush1.msra.mxu0 0.0
    %1971 = vmatprep.mubr.f32.mxu0 0.0
    %1972 = vmatmul.mubr.f32.gmra.mrb[0].mxu0 %v1905
    %v1973 = vpop.f32.mrb[0].mxu0
    %v1974 = vadd.f32 %v71, %v1973
    %v1975 = vpop.f32.mrb[0].mxu0
    %1976 = vdwg.mxu0
    %v1977 = vxor.u32 %v1974, 2147483648
    %v1978 = vmul.f32 %v1977, 1.442695
    %v1979 = vpow.pop %v1978
    %v1980 = vadd.f32 %v1979, 1.0
    %v1981 = vrcp.pop %v1980
    %v1982 = vmul.f32 1.0, %v1981
    %v1983 = vtanh.pop %v1974
    %v1984 = vmul.f32 %v1982, %v1712
    %1986 = vrot.lane.b32.xlu0 %v1983, 64
    %v1987 = vpop.permute.xlu0 %1986
    %v1989 = vmul.f32 %v1982, %v1987
    %1991 = vrot.lane.b32.xlu0 %v1989, 32
    %v1992 = vpop.permute.xlu0 %1991
    %v1994 = vadd.f32 %v1984, %v1992
    %v1995 = vtanh.pop %v1994
    %1997 = vrot.lane.b32.xlu0 %v1995, 64
    %v1998 = vpop.permute.xlu0 %1997
    %v2000 = vmul.f32 %v1982, %v1998
    %2002 = vrot.lane.b32.xlu0 %v2000, 32
    %v2003 = vpop.permute.xlu0 %2002
    %v2004 = vsel %vm95, %v2003, 0
    %2006 = vmatprep.subr.mxu0 0.0
    %2007 = vmatpush1.msra.mxu0 %v73
    %2008 = vmatprep.subr.mxu0 0.0
    %2009 = vmatpush1.msra.mxu0 %v74
    %2010 = vmatprep.subr.mxu0 0.0
    %2011 = vmatpush1.msra.mxu0 %v75
    %2012 = vmatprep.subr.mxu0 0.0
    %2013 = vmatpush1.msra.mxu0 %v76
    %2014 = vmatprep.subr.mxu0 0.0
    %2015 = vmatpush1.msra.mxu0 0.0
    %2016 = vmatprep.subr.mxu0 0.0
    %2017 = vmatpush1.msra.mxu0 0.0
    %2018 = vmatprep.subr.mxu0 0.0
    %2019 = vmatpush1.msra.mxu0 0.0
    %2020 = vmatprep.subr.mxu0 0.0
    %2021 = vmatpush1.msra.mxu0 0.0
    %2022 = vmatprep.subr.mxu0 0.0
    %2023 = vmatpush1.msra.mxu0 0.0
    %2024 = vmatprep.subr.mxu0 0.0
    %2025 = vmatpush1.msra.mxu0 0.0
    %2026 = vmatprep.subr.mxu0 0.0
    %2027 = vmatpush1.msra.mxu0 0.0
    %2028 = vmatprep.subr.mxu0 0.0
    %2029 = vmatpush1.msra.mxu0 0.0
    %2030 = vmatprep.subr.mxu0 0.0
    %2031 = vmatpush1.msra.mxu0 0.0
    %2032 = vmatprep.subr.mxu0 0.0
    %2033 = vmatpush1.msra.mxu0 0.0
    %2034 = vmatprep.subr.mxu0 0.0
    %2035 = vmatpush1.msra.mxu0 0.0
    %2036 = vmatprep.subr.mxu0 0.0
    %2037 = vmatpush1.msra.mxu0 0.0
    %2038 = vmatprep.subr.mxu0 0.0
    %2039 = vmatpush1.msra.mxu0 0.0
    %2040 = vmatprep.subr.mxu0 0.0
    %2041 = vmatpush1.msra.mxu0 0.0
    %2042 = vmatprep.subr.mxu0 0.0
    %2043 = vmatpush1.msra.mxu0 0.0
    %2044 = vmatprep.subr.mxu0 0.0
    %2045 = vmatpush1.msra.mxu0 0.0
    %2046 = vmatprep.subr.mxu0 0.0
    %2047 = vmatpush1.msra.mxu0 0.0
    %2048 = vmatprep.subr.mxu0 0.0
    %2049 = vmatpush1.msra.mxu0 0.0
    %2050 = vmatprep.subr.mxu0 0.0
    %2051 = vmatpush1.msra.mxu0 0.0
    %2052 = vmatprep.subr.mxu0 0.0
    %2053 = vmatpush1.msra.mxu0 0.0
    %2054 = vmatprep.subr.mxu0 0.0
    %2055 = vmatpush1.msra.mxu0 0.0
    %2056 = vmatprep.subr.mxu0 0.0
    %2057 = vmatpush1.msra.mxu0 0.0
    %2058 = vmatprep.subr.mxu0 0.0
    %2059 = vmatpush1.msra.mxu0 0.0
    %2060 = vmatprep.subr.mxu0 0.0
    %2061 = vmatpush1.msra.mxu0 0.0
    %2062 = vmatprep.subr.mxu0 0.0
    %2063 = vmatpush1.msra.mxu0 0.0
    %2064 = vmatprep.subr.mxu0 0.0
    %2065 = vmatpush1.msra.mxu0 0.0
    %2066 = vmatprep.subr.mxu0 0.0
    %2067 = vmatpush1.msra.mxu0 0.0
    %2068 = vmatprep.subr.mxu0 0.0
    %2069 = vmatpush1.msra.mxu0 0.0
    %2070 = vmatprep.mubr.f32.mxu0 0.0
    %2071 = vmatmul.mubr.f32.gmra.mrb[0].mxu0 %v2004
    %v2072 = vpop.f32.mrb[0].mxu0
    %v2073 = vadd.f32 %v82, %v2072
    %v2074 = vpop.f32.mrb[0].mxu0
    %2075 = vdwg.mxu0
    %2077 = vrot.lane.b32.xlu0 %v1895, 64
    %v2078 = vpop.permute.xlu0 %2077
    %v2080 = vsel %vm95, %v2003, %v2078
    %v2082 = vsel %vm97, %v2080, 0
    %2084 = vmatprep.subr.mxu0 0.0
    %2085 = vmatpush1.msra.mxu0 %v41
    %2086 = vmatprep.subr.mxu0 0.0
    %2087 = vmatpush1.msra.mxu0 %v42
    %2088 = vmatprep.subr.mxu0 0.0
    %2089 = vmatpush1.msra.mxu0 %v43
    %2090 = vmatprep.subr.mxu0 0.0
    %2091 = vmatpush1.msra.mxu0 %v44
    %2092 = vmatprep.subr.mxu0 0.0
    %2093 = vmatpush1.msra.mxu0 %v45
    %2094 = vmatprep.subr.mxu0 0.0
    %2095 = vmatpush1.msra.mxu0 %v46
    %2096 = vmatprep.subr.mxu0 0.0
    %2097 = vmatpush1.msra.mxu0 %v47
    %2098 = vmatprep.subr.mxu0 0.0
    %2099 = vmatpush1.msra.mxu0 %v48
    %2100 = vmatprep.subr.mxu0 0.0
    %2101 = vmatpush1.msra.mxu0 0.0
    %2102 = vmatprep.subr.mxu0 0.0
    %2103 = vmatpush1.msra.mxu0 0.0
    %2104 = vmatprep.subr.mxu0 0.0
    %2105 = vmatpush1.msra.mxu0 0.0
    %2106 = vmatprep.subr.mxu0 0.0
    %2107 = vmatpush1.msra.mxu0 0.0
    %2108 = vmatprep.subr.mxu0 0.0
    %2109 = vmatpush1.msra.mxu0 0.0
    %2110 = vmatprep.subr.mxu0 0.0
    %2111 = vmatpush1.msra.mxu0 0.0
    %2112 = vmatprep.subr.mxu0 0.0
    %2113 = vmatpush1.msra.mxu0 0.0
    %2114 = vmatprep.subr.mxu0 0.0
    %2115 = vmatpush1.msra.mxu0 0.0
    %2116 = vmatprep.subr.mxu0 0.0
    %2117 = vmatpush1.msra.mxu0 0.0
    %2118 = vmatprep.subr.mxu0 0.0
    %2119 = vmatpush1.msra.mxu0 0.0
    %2120 = vmatprep.subr.mxu0 0.0
    %2121 = vmatpush1.msra.mxu0 0.0
    %2122 = vmatprep.subr.mxu0 0.0
    %2123 = vmatpush1.msra.mxu0 0.0
    %2124 = vmatprep.subr.mxu0 0.0
    %2125 = vmatpush1.msra.mxu0 0.0
    %2126 = vmatprep.subr.mxu0 0.0
    %2127 = vmatpush1.msra.mxu0 0.0
    %2128 = vmatprep.subr.mxu0 0.0
    %2129 = vmatpush1.msra.mxu0 0.0
    %2130 = vmatprep.subr.mxu0 0.0
    %2131 = vmatpush1.msra.mxu0 0.0
    %2132 = vmatprep.subr.mxu0 0.0
    %2133 = vmatpush1.msra.mxu0 0.0
    %2134 = vmatprep.subr.mxu0 0.0
    %2135 = vmatpush1.msra.mxu0 0.0
    %2136 = vmatprep.subr.mxu0 0.0
    %2137 = vmatpush1.msra.mxu0 0.0
    %2138 = vmatprep.subr.mxu0 0.0
    %2139 = vmatpush1.msra.mxu0 0.0
    %2140 = vmatprep.subr.mxu0 0.0
    %2141 = vmatpush1.msra.mxu0 0.0
    %2142 = vmatprep.subr.mxu0 0.0
    %2143 = vmatpush1.msra.mxu0 0.0
    %2144 = vmatprep.subr.mxu0 0.0
    %2145 = vmatpush1.msra.mxu0 0.0
    %2146 = vmatprep.subr.mxu0 0.0
    %2147 = vmatpush1.msra.mxu0 0.0
    %2148 = vmatprep.mubr.f32.mxu0 0.0
    %2149 = vmatmul.mubr.f32.gmra.mrb[0].mxu0 %v2082
    %v2150 = vpop.f32.mrb[0].mxu0
    %v2151 = vadd.f32 %v63, %v2150
    %v2152 = vpop.f32.mrb[0].mxu0
    %2153 = vdwg.mxu0
    %v2154 = vxor.u32 %v2151, 2147483648
    %v2155 = vmul.f32 %v2154, 1.442695
    %v2156 = vpow.pop %v2155
    %v2157 = vadd.f32 %v2156, 1.0
    %v2158 = vrcp.pop %v2157
    %v2159 = vmul.f32 1.0, %v2158
    %v2160 = vtanh.pop %v2151
    %v2161 = vmul.f32 %v2159, %v1889
    %2163 = vrot.lane.b32.xlu0 %v2160, 64
    %v2164 = vpop.permute.xlu0 %2163
    %v2166 = vmul.f32 %v2159, %v2164
    %2168 = vrot.lane.b32.xlu0 %v2166, 32
    %v2169 = vpop.permute.xlu0 %2168
    %v2171 = vadd.f32 %v2161, %v2169
    %v2172 = vtanh.pop %v2171
    %2174 = vrot.lane.b32.xlu0 %v2172, 64
    %v2175 = vpop.permute.xlu0 %2174
    %v2177 = vmul.f32 %v2159, %v2175
    %2179 = vrot.lane.b32.xlu0 %v2177, 32
    %v2180 = vpop.permute.xlu0 %2179
    %2182 = vrot.lane.b32.xlu0 %v2000, 64
    %v2183 = vpop.permute.xlu0 %2182
    %v2185 = vsel %vm95, %v2180, %v2183
    %v2187 = vsel %vm97, %v2185, 0
    %2189 = vmatprep.subr.mxu0 0.0
    %2190 = vmatpush1.msra.mxu0 %v50
    %2191 = vmatprep.subr.mxu0 0.0
    %2192 = vmatpush1.msra.mxu0 %v51
    %2193 = vmatprep.subr.mxu0 0.0
    %2194 = vmatpush1.msra.mxu0 %v52
    %2195 = vmatprep.subr.mxu0 0.0
    %2196 = vmatpush1.msra.mxu0 %v53
    %2197 = vmatprep.subr.mxu0 0.0
    %2198 = vmatpush1.msra.mxu0 %v54
    %2199 = vmatprep.subr.mxu0 0.0
    %2200 = vmatpush1.msra.mxu0 %v55
    %2201 = vmatprep.subr.mxu0 0.0
    %2202 = vmatpush1.msra.mxu0 %v56
    %2203 = vmatprep.subr.mxu0 0.0
    %2204 = vmatpush1.msra.mxu0 %v57
    %2205 = vmatprep.subr.mxu0 0.0
    %2206 = vmatpush1.msra.mxu0 0.0
    %2207 = vmatprep.subr.mxu0 0.0
    %2208 = vmatpush1.msra.mxu0 0.0
    %2209 = vmatprep.subr.mxu0 0.0
    %2210 = vmatpush1.msra.mxu0 0.0
    %2211 = vmatprep.subr.mxu0 0.0
    %2212 = vmatpush1.msra.mxu0 0.0
    %2213 = vmatprep.subr.mxu0 0.0
    %2214 = vmatpush1.msra.mxu0 0.0
    %2215 = vmatprep.subr.mxu0 0.0
    %2216 = vmatpush1.msra.mxu0 0.0
    %2217 = vmatprep.subr.mxu0 0.0
    %2218 = vmatpush1.msra.mxu0 0.0
    %2219 = vmatprep.subr.mxu0 0.0
    %2220 = vmatpush1.msra.mxu0 0.0
    %2221 = vmatprep.subr.mxu0 0.0
    %2222 = vmatpush1.msra.mxu0 0.0
    %2223 = vmatprep.subr.mxu0 0.0
    %2224 = vmatpush1.msra.mxu0 0.0
    %2225 = vmatprep.subr.mxu0 0.0
    %2226 = vmatpush1.msra.mxu0 0.0
    %2227 = vmatprep.subr.mxu0 0.0
    %2228 = vmatpush1.msra.mxu0 0.0
    %2229 = vmatprep.subr.mxu0 0.0
    %2230 = vmatpush1.msra.mxu0 0.0
    %2231 = vmatprep.subr.mxu0 0.0
    %2232 = vmatpush1.msra.mxu0 0.0
    %2233 = vmatprep.subr.mxu0 0.0
    %2234 = vmatpush1.msra.mxu0 0.0
    %2235 = vmatprep.subr.mxu0 0.0
    %2236 = vmatpush1.msra.mxu0 0.0
    %2237 = vmatprep.subr.mxu0 0.0
    %2238 = vmatpush1.msra.mxu0 0.0
    %2239 = vmatprep.subr.mxu0 0.0
    %2240 = vmatpush1.msra.mxu0 0.0
    %2241 = vmatprep.subr.mxu0 0.0
    %2242 = vmatpush1.msra.mxu0 0.0
    %2243 = vmatprep.subr.mxu0 0.0
    %2244 = vmatpush1.msra.mxu0 0.0
    %2245 = vmatprep.subr.mxu0 0.0
    %2246 = vmatpush1.msra.mxu0 0.0
    %2247 = vmatprep.subr.mxu0 0.0
    %2248 = vmatpush1.msra.mxu0 0.0
    %2249 = vmatprep.subr.mxu0 0.0
    %2250 = vmatpush1.msra.mxu0 0.0
    %2251 = vmatprep.subr.mxu0 0.0
    %2252 = vmatpush1.msra.mxu0 0.0
    %2253 = vmatprep.mubr.f32.mxu0 0.0
    %2254 = vmatmul.mubr.f32.gmra.mrb[0].mxu0 %v2187
    %v2255 = vpop.f32.mrb[0].mxu0
    %v2256 = vadd.f32 %v71, %v2255
    %v2257 = vpop.f32.mrb[0].mxu0
    %2258 = vdwg.mxu0
    %v2259 = vxor.u32 %v2256, 2147483648
    %v2260 = vmul.f32 %v2259, 1.442695
    %v2261 = vpow.pop %v2260
    %v2262 = vadd.f32 %v2261, 1.0
    %v2263 = vrcp.pop %v2262
    %v2264 = vmul.f32 1.0, %v2263
    %v2265 = vtanh.pop %v2256
    %v2266 = vmul.f32 %v2264, %v1994
    %2268 = vrot.lane.b32.xlu0 %v2265, 64
    %v2269 = vpop.permute.xlu0 %2268
    %v2271 = vmul.f32 %v2264, %v2269
    %2273 = vrot.lane.b32.xlu0 %v2271, 32
    %v2274 = vpop.permute.xlu0 %2273
    %v2276 = vadd.f32 %v2266, %v2274
    %v2277 = vtanh.pop %v2276
    %2279 = vrot.lane.b32.xlu0 %v2277, 64
    %v2280 = vpop.permute.xlu0 %2279
    %v2282 = vmul.f32 %v2264, %v2280
    %2284 = vrot.lane.b32.xlu0 %v2282, 32
    %v2285 = vpop.permute.xlu0 %2284
    %v2286 = vsel %vm95, %v2285, 0
    %2288 = vmatprep.subr.mxu0 0.0
    %2289 = vmatpush1.msra.mxu0 %v73
    %2290 = vmatprep.subr.mxu0 0.0
    %2291 = vmatpush1.msra.mxu0 %v74
    %2292 = vmatprep.subr.mxu0 0.0
    %2293 = vmatpush1.msra.mxu0 %v75
    %2294 = vmatprep.subr.mxu0 0.0
    %2295 = vmatpush1.msra.mxu0 %v76
    %2296 = vmatprep.subr.mxu0 0.0
    %2297 = vmatpush1.msra.mxu0 0.0
    %2298 = vmatprep.subr.mxu0 0.0
    %2299 = vmatpush1.msra.mxu0 0.0
    %2300 = vmatprep.subr.mxu0 0.0
    %2301 = vmatpush1.msra.mxu0 0.0
    %2302 = vmatprep.subr.mxu0 0.0
    %2303 = vmatpush1.msra.mxu0 0.0
    %2304 = vmatprep.subr.mxu0 0.0
    %2305 = vmatpush1.msra.mxu0 0.0
    %2306 = vmatprep.subr.mxu0 0.0
    %2307 = vmatpush1.msra.mxu0 0.0
    %2308 = vmatprep.subr.mxu0 0.0
    %2309 = vmatpush1.msra.mxu0 0.0
    %2310 = vmatprep.subr.mxu0 0.0
    %2311 = vmatpush1.msra.mxu0 0.0
    %2312 = vmatprep.subr.mxu0 0.0
    %2313 = vmatpush1.msra.mxu0 0.0
    %2314 = vmatprep.subr.mxu0 0.0
    %2315 = vmatpush1.msra.mxu0 0.0
    %2316 = vmatprep.subr.mxu0 0.0
    %2317 = vmatpush1.msra.mxu0 0.0
    %2318 = vmatprep.subr.mxu0 0.0
    %2319 = vmatpush1.msra.mxu0 0.0
    %2320 = vmatprep.subr.mxu0 0.0
    %2321 = vmatpush1.msra.mxu0 0.0
    %2322 = vmatprep.subr.mxu0 0.0
    %2323 = vmatpush1.msra.mxu0 0.0
    %2324 = vmatprep.subr.mxu0 0.0
    %2325 = vmatpush1.msra.mxu0 0.0
    %2326 = vmatprep.subr.mxu0 0.0
    %2327 = vmatpush1.msra.mxu0 0.0
    %2328 = vmatprep.subr.mxu0 0.0
    %2329 = vmatpush1.msra.mxu0 0.0
    %2330 = vmatprep.subr.mxu0 0.0
    %2331 = vmatpush1.msra.mxu0 0.0
    %2332 = vmatprep.subr.mxu0 0.0
    %2333 = vmatpush1.msra.mxu0 0.0
    %2334 = vmatprep.subr.mxu0 0.0
    %2335 = vmatpush1.msra.mxu0 0.0
    %2336 = vmatprep.subr.mxu0 0.0
    %2337 = vmatpush1.msra.mxu0 0.0
    %2338 = vmatprep.subr.mxu0 0.0
    %2339 = vmatpush1.msra.mxu0 0.0
    %2340 = vmatprep.subr.mxu0 0.0
    %2341 = vmatpush1.msra.mxu0 0.0
    %2342 = vmatprep.subr.mxu0 0.0
    %2343 = vmatpush1.msra.mxu0 0.0
    %2344 = vmatprep.subr.mxu0 0.0
    %2345 = vmatpush1.msra.mxu0 0.0
    %2346 = vmatprep.subr.mxu0 0.0
    %2347 = vmatpush1.msra.mxu0 0.0
    %2348 = vmatprep.subr.mxu0 0.0
    %2349 = vmatpush1.msra.mxu0 0.0
    %2350 = vmatprep.subr.mxu0 0.0
    %2351 = vmatpush1.msra.mxu0 0.0
    %2352 = vmatprep.mubr.f32.mxu0 0.0
    %2353 = vmatmul.mubr.f32.gmra.mrb[0].mxu0 %v2286
    %v2354 = vpop.f32.mrb[0].mxu0
    %v2355 = vadd.f32 %v82, %v2354
    %v2356 = vpop.f32.mrb[0].mxu0
    %2357 = vdwg.mxu0
    %2359 = vrot.lane.b32.xlu0 %v663, 16
    %v2360 = vpop.permute.xlu0 %2359
    %2363 = vrot.lane.b32.xlu0 %v945, 32
    %v2364 = vpop.permute.xlu0 %2363
    %2367 = vrot.lane.b32.xlu0 %v1227, 48
    %v2368 = vpop.permute.xlu0 %2367
    %2371 = vrot.lane.b32.xlu0 %v1509, 64
    %v2372 = vpop.permute.xlu0 %2371
    %2375 = vrot.lane.b32.xlu0 %v1791, 80
    %v2376 = vpop.permute.xlu0 %2375
    %2379 = vrot.lane.b32.xlu0 %v2073, 96
    %v2380 = vpop.permute.xlu0 %2379
    %2383 = vrot.lane.b32.xlu0 %v2355, 112
    %v2384 = vpop.permute.xlu0 %2383
    %vm2386 = vcmask 130048
    %v2387 = vsel %vm2386, %v381, %v2360
    %v2388 = vsel %vm95, %v2387, %v2364
    %vm2389 = vcmask 392192
    %v2390 = vsel %vm2389, %v2388, %v2368
    %v2391 = vsel %vm97, %v2390, %v2372
    %vm2392 = vcmask 654336
    %v2393 = vsel %vm2392, %v2391, %v2376
    %vm2394 = vcmask 785408
    %v2395 = vsel %vm2394, %v2393, %v2380
    %vm2396 = vcmask 916480
    %v2397 = vsel %vm2396, %v2395, %v2384
    %2398 = vst [vmem:[#allocation5] sm:$0x3] %v2397
    // Predicated region
    $region34: #{tpu_custom_call.1} parent=1 // pred_check
      _
    $region35: #{tpu_custom_call.1} parent=1 // pred_check_branch
      %2400 = sbr.rel (0) target = $region37
    $region36: #{tpu_custom_call.1} parent=1 // pred_region
      %s2402 = ssub.s32 32, 32
      %2403 = vsyncadd [#allocation4], %s2402
      %s2405 = sshll.u32 [#allocation5], 4
      %s2406 = int_to_ptr.vmem [resolvable:$true] %s2405
      %2408 = dma.vmem_to_hbm [thread:$0]  %s2406, 32, %s7, [#allocation4]
    $region37: #{tpu_custom_call.1} parent=1 // pred_fallthru
      _
    // Predicated region
    $region38: #{tpu_custom_call.1} parent=1 // pred_check
      _
    $region39: #{tpu_custom_call.1} parent=1 // pred_check_branch
      %2410 = sbr.rel (0) target = $region41
    $region40: #{tpu_custom_call.1} parent=1 // pred_region
      %2411 = dma.done [#allocation4], 32
    $region41: #{tpu_custom_call.1} parent=1 // pred_fallthru
      _
    %2412 = vsyncpa [#allocation3], 1
    %2413 = vsyncpa [#allocation4], 1

</llo_original>
